<compile_context>
chip_gen: v7x
topology: tpu7x:2x2x1
jax: 0.10.0
libtpu: 0.0.40
codegen_flags: <defaults>
</compile_context>

<pallas_src>
import functools

import jax
import jax.numpy as jnp
import numpy as np
from jax.experimental import pallas as pl
from jax.experimental.pallas import tpu as pltpu

K_REL = 5  # relative-state feature dim (dx/r, dy/r, f2, f3, r_trans)


def _critic_q_kernel(qs_ref, pos_ref,
                     wqk_ref, w1v_ref, w1q_ref, b1_ref,
                     w2_ref, b2_ref, woutt_ref, bout_ref,
                     out_ref, *, num_heads, tb, t):
    h = num_heads
    k = K_REL
    mm = tb * t

    qs = qs_ref[...]                      # (M, F)   rows m = (batch, token)
    pos = pos_ref[...]                    # (TB, 4, T)

    # ---- relative-state feature planes, all (M, T): sublanes = m, lanes = j ----
    planes = []
    for c in range(4):
        pc = pos[:, c, :]                                            # (TB, T)
        planes.append((pc[:, None, :] - pc[:, :, None]).reshape(mm, t))
    dx, dy, f2, f3 = planes                                          # rel[m, j] = p[j] - p[i]

    ii = jnp.broadcast_to(
        jax.lax.broadcasted_iota(jnp.int32, (t, t), 0)[None, :, :],
        (tb, t, t)).reshape(mm, t)
    jj = jax.lax.broadcasted_iota(jnp.int32, (mm, t), 1)
    diag = ii == jj                                                  # (M, T) self-pair mask
    diag_add = jnp.where(diag, jnp.float32(-1e30), jnp.float32(0.0)) # additive softmax mask

    r = jnp.sqrt(dx * dx + dy * dy)
    inv_r = pl.reciprocal(jnp.where(diag, 1.0, r), approx=True)
    r_trans = pl.reciprocal(1.0 + jnp.exp(5.0 * (r - 0.2) - 1.0), approx=True)
    feats = (dx * inv_r, dy * inv_r, f2, f3, r_trans)                # 5 x (M, T)

    # ---- queries with the key projection (and 1/sqrt(5)) pre-folded: qk[:, h*5 + c] ----
    qk = jnp.dot(qs, wqk_ref[...], preferred_element_type=jnp.float32)   # (M, 5h)

    wrel_cols = []
    for hh in range(h):                       # num_heads is small and static
        base = hh * k
        logits = qk[:, base:base + 1] * feats[0]
        for c in range(1, k):
            logits = logits + qk[:, base + c:base + c + 1] * feats[c]
        logits = logits + diag_add                       # exclude self (== torch ragged gather)
        lmax = jnp.max(logits, axis=-1, keepdims=True)
        e = jnp.exp(logits - lmax)
        w = e * pl.reciprocal(jnp.sum(e, axis=-1, keepdims=True), approx=True)
        for c in range(k):
            wrel_cols.append(jnp.sum(w * feats[c], axis=-1, keepdims=True))
    wrel = jnp.concatenate(wrel_cols, axis=-1)                       # (M, 5h), cols (h, c)

    # ---- MLP head; value projection + first layer are pre-folded into w1v ----
    x = (jnp.dot(wrel, w1v_ref[...], preferred_element_type=jnp.float32)
         + jnp.dot(qs, w1q_ref[...], preferred_element_type=jnp.float32)
         + b1_ref[...])
    x = jnp.maximum(x, 0.0)
    x = jnp.maximum(jnp.dot(x, w2_ref[...], preferred_element_type=jnp.float32)
                    + b2_ref[...], 0.0)                              # (M, H1)

    # lane-dense output row: contract hidden dim of (1, H1) with (M, H1) -> (1, M)
    val = jax.lax.dot_general(woutt_ref[...], x,
                              dimension_numbers=(((1,), (1,)), ((), ())),
                              preferred_element_type=jnp.float32) + bout_ref[...]
    out_ref[0] = val.astype(out_ref.dtype)


def _pick_batch_block(b, t, row_cap):
    """Largest batch block that keeps M=TB*T <= row_cap, prefers >=2 grid steps (v7x 2 TCs)."""
    divisors = [d for d in range(b, 0, -1) if b % d == 0]
    fitting = [d for d in divisors if d * t <= row_cap] or [1]

    def score(d):
        rows = d * t
        return ((rows % 8 == 0) or (d == b),   # layout-friendly row count
                b // d >= 2,                   # keep both v7x TensorCores busy
                rows)                          # then: biggest block
    return max(fitting, key=score)


def rel_dist_transformer_q(state, action, params, *, num_heads, block_rows=512):
    b, t, sd = state.shape
    ad = action.shape[-1]
    f = sd + ad
    h = num_heads
    k = K_REL
    hk = h * k

    tb = _pick_batch_block(b, t, block_rows)
    nblk = b // tb
    m = tb * t

    wq, wk, wv = params["wq"], params["wk"], params["wv"]
    w1, b1 = params["w1"], params["b1"]
    w2, b2 = params["w2"], params["b2"]
    wout, bout = params["wout"], params["bout"]
    hidden = w1.shape[1]

    # Fold the (5 -> 5h) key projection into the query projection, and the (5 -> 5h) value
    # projection into the first MLP layer.  Exact algebra, done once in XLA outside the kernel.
    wqk = (jnp.einsum("fhk,chk->fhc", wq.reshape(f, h, k), wk.reshape(k, h, k))
           .reshape(f, hk) * (1.0 / np.sqrt(k))).astype(jnp.float32)
    w1v = jnp.einsum("chk,hkn->hcn", wv.reshape(k, h, k),
                     w1[:hk].reshape(h, k, hidden)).reshape(hk, hidden).astype(jnp.float32)
    w1q = w1[hk:].astype(jnp.float32)
    wout_t = wout.T                                       # (1, hidden) -> lane-dense final matmul

    # Kernel-friendly input layouts (built once in XLA, outside the kernel).
    qs2d = jnp.concatenate([state, action], axis=-1).reshape(b * t, f)   # (B*T, F)
    pos = jnp.transpose(state[:, :, 0:4], (0, 2, 1))                     # (B, 4, T)

    kernel = functools.partial(_critic_q_kernel, num_heads=h, tb=tb, t=t)

    def const_spec(arr):
        nd = arr.ndim
        return pl.BlockSpec(arr.shape, lambda i, _n=nd: (0,) * _n)

    out_rows = pl.pallas_call(
        kernel,
        out_shape=jax.ShapeDtypeStruct((nblk, 1, m), jnp.float32),
        grid=(nblk,),
        in_specs=[
            pl.BlockSpec((m, f), lambda i: (i, 0)),
            pl.BlockSpec((tb, 4, t), lambda i: (i, 0, 0)),
            const_spec(wqk), const_spec(w1v), const_spec(w1q), const_spec(b1),
            const_spec(w2), const_spec(b2), const_spec(wout_t), const_spec(bout),
        ],
        out_specs=pl.BlockSpec((1, 1, m), lambda i: (i, 0, 0)),
        compiler_params=pltpu.CompilerParams(dimension_semantics=("parallel",)),
    )(qs2d, pos, wqk, w1v, w1q, b1, w2, b2, wout_t, bout)

    return out_rows.reshape(b, t, 1)


def init_params(key, state_dim, action_dim, num_heads, hidden_dim):
    """Deterministic synthetic parameters (shapes follow the nn.Module __init__)."""
    k = K_REL
    keys = jax.random.split(key, 9)
    in_dim = k * num_heads + state_dim + action_dim

    def lin_w(kk, fan_in, fan_out):
        bound = 1.0 / (fan_in ** 0.5)
        return jax.random.uniform(kk, (fan_in, fan_out), jnp.float32, -bound, bound)

    def lin_b(kk, fan_in, fan_out):
        bound = 1.0 / (fan_in ** 0.5)
        return jax.random.uniform(kk, (1, fan_out), jnp.float32, -bound, bound)

    return dict(
        wq=lin_w(keys[0], state_dim + action_dim, k * num_heads),
        wk=lin_w(keys[1], k, k * num_heads),
        wv=lin_w(keys[2], k, k * num_heads),
        w1=lin_w(keys[3], in_dim, hidden_dim),
        b1=lin_b(keys[4], in_dim, hidden_dim),
        w2=lin_w(keys[5], hidden_dim, hidden_dim),
        b2=lin_b(keys[6], hidden_dim, hidden_dim),
        wout=jax.random.uniform(keys[7], (hidden_dim, 1), jnp.float32, -0.003, 0.003),
        bout=jax.random.uniform(keys[8], (1, 1), jnp.float32, -0.003, 0.003),
    )


def reference_forward(state, action, params, num_heads):
    """Plain-JAX reference reproducing the exact PyTorch semantics (ragged off-diag gather)."""
    b, t, _ = state.shape
    k = K_REL
    h = num_heads

    q_state = jnp.concatenate([state, action], axis=-1)
    p = state[:, :, 0:4]
    rel = p[:, None, :, :] - p[:, :, None, :]                     # rel[b,i,j] = p[b,j]-p[b,i]

    idx = np.array([[j for j in range(t) if j != i] for i in range(t)], dtype=np.int32)
    rel_g = rel[:, jnp.arange(t)[:, None], idx]                   # (b, t, t-1, 4)

    r = jnp.sqrt(rel_g[..., 0] ** 2 + rel_g[..., 1] ** 2)[..., None]
    r_trans = 1.0 / (1.0 + jnp.exp(-1.0 + 5.0 * (r - 0.2)))
    rel_g = jnp.concatenate([rel_g[..., 0:2] / r, rel_g[..., 2:4], r_trans], axis=-1)

    queries = (q_state @ params["wq"]).reshape(b, t, h, k)
    keys = (rel_g.reshape(b, t * (t - 1), k) @ params["wk"]).reshape(b, t, t - 1, h, k)
    values = (rel_g.reshape(b, t * (t - 1), k) @ params["wv"]).reshape(b, t, t - 1, h, k)

    w_prime = jnp.einsum("btjhk,bthk->btjh", keys, queries) / (k ** 0.5)
    w = jax.nn.softmax(w_prime, axis=2)
    x = jnp.einsum("btjh,btjhk->bthk", w, values).reshape(b, t, h * k)

    x = jnp.concatenate([x, q_state], axis=-1)
    x = jnp.maximum(x @ params["w1"] + params["b1"], 0.0)
    x = jnp.maximum(x @ params["w2"] + params["b2"], 0.0)
    return x @ params["wout"] + params["bout"]


if __name__ == "__main__":
    B, T = 8, 8
    STATE_DIM, ACTION_DIM = 6, 2
    NUM_HEADS, HIDDEN_DIM = 3, 32

    root = jax.random.PRNGKey(0)
    k_state, k_action, k_param = jax.random.split(root, 3)

    state = jax.random.normal(k_state, (B, T, STATE_DIM), dtype=jnp.float32)
    action = jax.random.normal(k_action, (B, T, ACTION_DIM), dtype=jnp.float32)
    params = init_params(k_param, STATE_DIM, ACTION_DIM, NUM_HEADS, HIDDEN_DIM)

    out = rel_dist_transformer_q(state, action, params, num_heads=NUM_HEADS)
    out = jax.block_until_ready(out)

    ref = jax.block_until_ready(reference_forward(state, action, params, NUM_HEADS))
    assert out.shape == (B, T, 1), out.shape
    max_err = float(jnp.max(jnp.abs(out - ref)))
    assert jnp.allclose(out, ref, atol=1e-4, rtol=1e-3), max_err

    print("KERNEL_OK")
</pallas_src>

<mosaic_0001>
module attributes {stable_mosaic.version = 11 : i64} {
  func.func @_critic_q_kernel(%arg0: i32, %arg1: memref<32x8xf32, #tpu.memory_space<vmem>>, %arg2: memref<4x4x8xf32, #tpu.memory_space<vmem>>, %arg3: memref<8x15xf32, #tpu.memory_space<vmem>>, %arg4: memref<15x32xf32, #tpu.memory_space<vmem>>, %arg5: memref<8x32xf32, #tpu.memory_space<vmem>>, %arg6: memref<1x32xf32, #tpu.memory_space<vmem>>, %arg7: memref<32x32xf32, #tpu.memory_space<vmem>>, %arg8: memref<1x32xf32, #tpu.memory_space<vmem>>, %arg9: memref<1x32xf32, #tpu.memory_space<vmem>>, %arg10: memref<1x1xf32, #tpu.memory_space<vmem>>, %arg11: memref<1x1x32xf32, #tpu.memory_space<vmem>>) attributes {dimension_semantics = [#tpu.dimension_semantics<parallel>], iteration_bounds = array<i64: 2>, scalar_prefetch = 0 : i64, scratch_operands = 0 : i64, tpu.core_type = #tpu.core_type<tc>, window_params = [{transform_indices = @transform_0, window_bounds = array<i64: 32, 8>}, {transform_indices = @transform_1, window_bounds = array<i64: 4, 4, 8>}, {pipeline_mode = #tpu.pipeline_mode<synchronous>, transform_indices = @transform_2, window_bounds = array<i64: 8, 15>}, {pipeline_mode = #tpu.pipeline_mode<synchronous>, transform_indices = @transform_3, window_bounds = array<i64: 15, 32>}, {pipeline_mode = #tpu.pipeline_mode<synchronous>, transform_indices = @transform_4, window_bounds = array<i64: 8, 32>}, {pipeline_mode = #tpu.pipeline_mode<synchronous>, transform_indices = @transform_5, window_bounds = array<i64: 1, 32>}, {pipeline_mode = #tpu.pipeline_mode<synchronous>, transform_indices = @transform_6, window_bounds = array<i64: 32, 32>}, {pipeline_mode = #tpu.pipeline_mode<synchronous>, transform_indices = @transform_7, window_bounds = array<i64: 1, 32>}, {pipeline_mode = #tpu.pipeline_mode<synchronous>, transform_indices = @transform_8, window_bounds = array<i64: 1, 32>}, {pipeline_mode = #tpu.pipeline_mode<synchronous>, transform_indices = @transform_9, window_bounds = array<i64: 1, 1>}, {transform_indices = @transform_10, window_bounds = array<i64: 1, 1, 32>}]} {
    %c0 = arith.constant 0 : index
    %c0_0 = arith.constant 0 : index
    %0 = vector.load %arg1[%c0, %c0_0] : memref<32x8xf32, #tpu.memory_space<vmem>>, vector<32x8xf32>
    %c0_1 = arith.constant 0 : index
    %c0_2 = arith.constant 0 : index
    %c0_3 = arith.constant 0 : index
    %1 = vector.load %arg2[%c0_1, %c0_2, %c0_3] : memref<4x4x8xf32, #tpu.memory_space<vmem>>, vector<4x4x8xf32>
    %2 = vector.extract_strided_slice %1 {offsets = [0, 0, 0], sizes = [4, 1, 8], strides = [1, 1, 1]} : vector<4x4x8xf32> to vector<4x1x8xf32>
    %3 = vector.shape_cast %2 : vector<4x1x8xf32> to vector<4x8xf32>
    %4 = vector.shape_cast %3 : vector<4x8xf32> to vector<4x1x8xf32>
    %5 = vector.shape_cast %3 : vector<4x8xf32> to vector<4x8x1xf32>
    %6 = vector.broadcast %4 : vector<4x1x8xf32> to vector<4x8x8xf32>
    %7 = vector.broadcast %5 : vector<4x8x1xf32> to vector<4x8x8xf32>
    %8 = arith.subf %6, %7 : vector<4x8x8xf32>
    %9 = vector.shape_cast %8 : vector<4x8x8xf32> to vector<32x8xf32>
    %10 = vector.extract_strided_slice %1 {offsets = [0, 1, 0], sizes = [4, 1, 8], strides = [1, 1, 1]} : vector<4x4x8xf32> to vector<4x1x8xf32>
    %11 = vector.shape_cast %10 : vector<4x1x8xf32> to vector<4x8xf32>
    %12 = vector.shape_cast %11 : vector<4x8xf32> to vector<4x1x8xf32>
    %13 = vector.shape_cast %11 : vector<4x8xf32> to vector<4x8x1xf32>
    %14 = vector.broadcast %12 : vector<4x1x8xf32> to vector<4x8x8xf32>
    %15 = vector.broadcast %13 : vector<4x8x1xf32> to vector<4x8x8xf32>
    %16 = arith.subf %14, %15 : vector<4x8x8xf32>
    %17 = vector.shape_cast %16 : vector<4x8x8xf32> to vector<32x8xf32>
    %18 = vector.extract_strided_slice %1 {offsets = [0, 2, 0], sizes = [4, 1, 8], strides = [1, 1, 1]} : vector<4x4x8xf32> to vector<4x1x8xf32>
    %19 = vector.shape_cast %18 : vector<4x1x8xf32> to vector<4x8xf32>
    %20 = vector.shape_cast %19 : vector<4x8xf32> to vector<4x1x8xf32>
    %21 = vector.shape_cast %19 : vector<4x8xf32> to vector<4x8x1xf32>
    %22 = vector.broadcast %20 : vector<4x1x8xf32> to vector<4x8x8xf32>
    %23 = vector.broadcast %21 : vector<4x8x1xf32> to vector<4x8x8xf32>
    %24 = arith.subf %22, %23 : vector<4x8x8xf32>
    %25 = vector.shape_cast %24 : vector<4x8x8xf32> to vector<32x8xf32>
    %26 = vector.extract_strided_slice %1 {offsets = [0, 3, 0], sizes = [4, 1, 8], strides = [1, 1, 1]} : vector<4x4x8xf32> to vector<4x1x8xf32>
    %27 = vector.shape_cast %26 : vector<4x1x8xf32> to vector<4x8xf32>
    %28 = vector.shape_cast %27 : vector<4x8xf32> to vector<4x1x8xf32>
    %29 = vector.shape_cast %27 : vector<4x8xf32> to vector<4x8x1xf32>
    %30 = vector.broadcast %28 : vector<4x1x8xf32> to vector<4x8x8xf32>
    %31 = vector.broadcast %29 : vector<4x8x1xf32> to vector<4x8x8xf32>
    %32 = arith.subf %30, %31 : vector<4x8x8xf32>
    %33 = vector.shape_cast %32 : vector<4x8x8xf32> to vector<32x8xf32>
    %34 = tpu.iota {dimensions = array<i32: 0>} : vector<8x8xi32>
    %35 = vector.shape_cast %34 : vector<8x8xi32> to vector<1x8x8xi32>
    %36 = vector.shape_cast %35 : vector<1x8x8xi32> to vector<1x8x8xi32>
    %37 = vector.broadcast %36 : vector<1x8x8xi32> to vector<4x8x8xi32>
    %38 = vector.shape_cast %37 : vector<4x8x8xi32> to vector<32x8xi32>
    %39 = tpu.iota {dimensions = array<i32: 1>} : vector<32x8xi32>
    %40 = arith.cmpi eq, %38, %39 : vector<32x8xi32>
    %cst = arith.constant -1.000000e+30 : f32
    %cst_4 = arith.constant 0.000000e+00 : f32
    %41 = vector.broadcast %cst : f32 to vector<32x8xf32>
    %42 = vector.broadcast %cst_4 : f32 to vector<32x8xf32>
    %43 = arith.select %40, %41, %42 : vector<32x8xi1>, vector<32x8xf32>
    %44 = arith.mulf %9, %9 : vector<32x8xf32>
    %45 = arith.mulf %17, %17 : vector<32x8xf32>
    %46 = arith.addf %44, %45 : vector<32x8xf32>
    %47 = math.sqrt %46 : vector<32x8xf32>
    %cst_5 = arith.constant 1.000000e+00 : f32
    %48 = vector.broadcast %cst_5 : f32 to vector<32x8xf32>
    %49 = arith.select %40, %48, %47 : vector<32x8xi1>, vector<32x8xf32>
    %50 = tpu.reciprocal %49 {approx = true} : vector<32x8xf32> -> vector<32x8xf32>
    %cst_6 = arith.constant 2.000000e-01 : f32
    %51 = vector.broadcast %cst_6 : f32 to vector<32x8xf32>
    %52 = arith.subf %47, %51 : vector<32x8xf32>
    %cst_7 = arith.constant 5.000000e+00 : f32
    %53 = vector.broadcast %cst_7 : f32 to vector<32x8xf32>
    %54 = arith.mulf %53, %52 : vector<32x8xf32>
    %cst_8 = arith.constant 1.000000e+00 : f32
    %55 = vector.broadcast %cst_8 : f32 to vector<32x8xf32>
    %56 = arith.subf %54, %55 : vector<32x8xf32>
    %57 = math.exp %56 : vector<32x8xf32>
    %cst_9 = arith.constant 1.000000e+00 : f32
    %58 = vector.broadcast %cst_9 : f32 to vector<32x8xf32>
    %59 = arith.addf %58, %57 : vector<32x8xf32>
    %60 = tpu.reciprocal %59 {approx = true} : vector<32x8xf32> -> vector<32x8xf32>
    %61 = arith.mulf %9, %50 : vector<32x8xf32>
    %62 = arith.mulf %17, %50 : vector<32x8xf32>
    %c0_10 = arith.constant 0 : index
    %c0_11 = arith.constant 0 : index
    %63 = vector.load %arg3[%c0_10, %c0_11] : memref<8x15xf32, #tpu.memory_space<vmem>>, vector<8x15xf32>
    %cst_12 = arith.constant dense<0.000000e+00> : vector<32x15xf32>
    %64 = tpu.matmul %0, %63, %cst_12 {dimension_numbers = #tpu.dot_dimension_numbers<[1], [0], [0], [1], [0, 0, 1, 1], [], []>} : vector<32x8xf32>, vector<8x15xf32>, vector<32x15xf32> -> vector<32x15xf32>
    %65 = vector.extract_strided_slice %64 {offsets = [0, 0], sizes = [32, 1], strides = [1, 1]} : vector<32x15xf32> to vector<32x1xf32>
    %66 = vector.broadcast %65 : vector<32x1xf32> to vector<32x8xf32>
    %67 = arith.mulf %66, %61 : vector<32x8xf32>
    %68 = vector.extract_strided_slice %64 {offsets = [0, 1], sizes = [32, 1], strides = [1, 1]} : vector<32x15xf32> to vector<32x1xf32>
    %69 = vector.broadcast %68 : vector<32x1xf32> to vector<32x8xf32>
    %70 = arith.mulf %69, %62 : vector<32x8xf32>
    %71 = arith.addf %67, %70 : vector<32x8xf32>
    %72 = vector.extract_strided_slice %64 {offsets = [0, 2], sizes = [32, 1], strides = [1, 1]} : vector<32x15xf32> to vector<32x1xf32>
    %73 = vector.broadcast %72 : vector<32x1xf32> to vector<32x8xf32>
    %74 = arith.mulf %73, %25 : vector<32x8xf32>
    %75 = arith.addf %71, %74 : vector<32x8xf32>
    %76 = vector.extract_strided_slice %64 {offsets = [0, 3], sizes = [32, 1], strides = [1, 1]} : vector<32x15xf32> to vector<32x1xf32>
    %77 = vector.broadcast %76 : vector<32x1xf32> to vector<32x8xf32>
    %78 = arith.mulf %77, %33 : vector<32x8xf32>
    %79 = arith.addf %75, %78 : vector<32x8xf32>
    %80 = vector.extract_strided_slice %64 {offsets = [0, 4], sizes = [32, 1], strides = [1, 1]} : vector<32x15xf32> to vector<32x1xf32>
    %81 = vector.broadcast %80 : vector<32x1xf32> to vector<32x8xf32>
    %82 = arith.mulf %81, %60 : vector<32x8xf32>
    %83 = arith.addf %79, %82 : vector<32x8xf32>
    %84 = arith.addf %83, %43 : vector<32x8xf32>
    %cst_13 = arith.constant dense<0xFF800000> : vector<32xf32>
    %85 = vector.multi_reduction <maximumf>, %84, %cst_13 [1] : vector<32x8xf32> to vector<32xf32>
    %86 = vector.shape_cast %85 : vector<32xf32> to vector<32x1xf32>
    %87 = vector.broadcast %86 : vector<32x1xf32> to vector<32x8xf32>
    %88 = arith.subf %84, %87 : vector<32x8xf32>
    %89 = math.exp %88 : vector<32x8xf32>
    %cst_14 = arith.constant dense<0.000000e+00> : vector<32xf32>
    %90 = vector.multi_reduction <add>, %89, %cst_14 [1] : vector<32x8xf32> to vector<32xf32>
    %91 = vector.shape_cast %90 : vector<32xf32> to vector<32x1xf32>
    %92 = tpu.reciprocal %91 {approx = true} : vector<32x1xf32> -> vector<32x1xf32>
    %93 = vector.broadcast %92 : vector<32x1xf32> to vector<32x8xf32>
    %94 = arith.mulf %89, %93 : vector<32x8xf32>
    %95 = arith.mulf %94, %61 : vector<32x8xf32>
    %cst_15 = arith.constant dense<0.000000e+00> : vector<32xf32>
    %96 = vector.multi_reduction <add>, %95, %cst_15 [1] : vector<32x8xf32> to vector<32xf32>
    %97 = vector.shape_cast %96 : vector<32xf32> to vector<32x1xf32>
    %98 = arith.mulf %94, %62 : vector<32x8xf32>
    %cst_16 = arith.constant dense<0.000000e+00> : vector<32xf32>
    %99 = vector.multi_reduction <add>, %98, %cst_16 [1] : vector<32x8xf32> to vector<32xf32>
    %100 = vector.shape_cast %99 : vector<32xf32> to vector<32x1xf32>
    %101 = arith.mulf %94, %25 : vector<32x8xf32>
    %cst_17 = arith.constant dense<0.000000e+00> : vector<32xf32>
    %102 = vector.multi_reduction <add>, %101, %cst_17 [1] : vector<32x8xf32> to vector<32xf32>
    %103 = vector.shape_cast %102 : vector<32xf32> to vector<32x1xf32>
    %104 = arith.mulf %94, %33 : vector<32x8xf32>
    %cst_18 = arith.constant dense<0.000000e+00> : vector<32xf32>
    %105 = vector.multi_reduction <add>, %104, %cst_18 [1] : vector<32x8xf32> to vector<32xf32>
    %106 = vector.shape_cast %105 : vector<32xf32> to vector<32x1xf32>
    %107 = arith.mulf %94, %60 : vector<32x8xf32>
    %cst_19 = arith.constant dense<0.000000e+00> : vector<32xf32>
    %108 = vector.multi_reduction <add>, %107, %cst_19 [1] : vector<32x8xf32> to vector<32xf32>
    %109 = vector.shape_cast %108 : vector<32xf32> to vector<32x1xf32>
    %110 = vector.extract_strided_slice %64 {offsets = [0, 5], sizes = [32, 1], strides = [1, 1]} : vector<32x15xf32> to vector<32x1xf32>
    %111 = vector.broadcast %110 : vector<32x1xf32> to vector<32x8xf32>
    %112 = arith.mulf %111, %61 : vector<32x8xf32>
    %113 = vector.extract_strided_slice %64 {offsets = [0, 6], sizes = [32, 1], strides = [1, 1]} : vector<32x15xf32> to vector<32x1xf32>
    %114 = vector.broadcast %113 : vector<32x1xf32> to vector<32x8xf32>
    %115 = arith.mulf %114, %62 : vector<32x8xf32>
    %116 = arith.addf %112, %115 : vector<32x8xf32>
    %117 = vector.extract_strided_slice %64 {offsets = [0, 7], sizes = [32, 1], strides = [1, 1]} : vector<32x15xf32> to vector<32x1xf32>
    %118 = vector.broadcast %117 : vector<32x1xf32> to vector<32x8xf32>
    %119 = arith.mulf %118, %25 : vector<32x8xf32>
    %120 = arith.addf %116, %119 : vector<32x8xf32>
    %121 = vector.extract_strided_slice %64 {offsets = [0, 8], sizes = [32, 1], strides = [1, 1]} : vector<32x15xf32> to vector<32x1xf32>
    %122 = vector.broadcast %121 : vector<32x1xf32> to vector<32x8xf32>
    %123 = arith.mulf %122, %33 : vector<32x8xf32>
    %124 = arith.addf %120, %123 : vector<32x8xf32>
    %125 = vector.extract_strided_slice %64 {offsets = [0, 9], sizes = [32, 1], strides = [1, 1]} : vector<32x15xf32> to vector<32x1xf32>
    %126 = vector.broadcast %125 : vector<32x1xf32> to vector<32x8xf32>
    %127 = arith.mulf %126, %60 : vector<32x8xf32>
    %128 = arith.addf %124, %127 : vector<32x8xf32>
    %129 = arith.addf %128, %43 : vector<32x8xf32>
    %cst_20 = arith.constant dense<0xFF800000> : vector<32xf32>
    %130 = vector.multi_reduction <maximumf>, %129, %cst_20 [1] : vector<32x8xf32> to vector<32xf32>
    %131 = vector.shape_cast %130 : vector<32xf32> to vector<32x1xf32>
    %132 = vector.broadcast %131 : vector<32x1xf32> to vector<32x8xf32>
    %133 = arith.subf %129, %132 : vector<32x8xf32>
    %134 = math.exp %133 : vector<32x8xf32>
    %cst_21 = arith.constant dense<0.000000e+00> : vector<32xf32>
    %135 = vector.multi_reduction <add>, %134, %cst_21 [1] : vector<32x8xf32> to vector<32xf32>
    %136 = vector.shape_cast %135 : vector<32xf32> to vector<32x1xf32>
    %137 = tpu.reciprocal %136 {approx = true} : vector<32x1xf32> -> vector<32x1xf32>
    %138 = vector.broadcast %137 : vector<32x1xf32> to vector<32x8xf32>
    %139 = arith.mulf %134, %138 : vector<32x8xf32>
    %140 = arith.mulf %139, %61 : vector<32x8xf32>
    %cst_22 = arith.constant dense<0.000000e+00> : vector<32xf32>
    %141 = vector.multi_reduction <add>, %140, %cst_22 [1] : vector<32x8xf32> to vector<32xf32>
    %142 = vector.shape_cast %141 : vector<32xf32> to vector<32x1xf32>
    %143 = arith.mulf %139, %62 : vector<32x8xf32>
    %cst_23 = arith.constant dense<0.000000e+00> : vector<32xf32>
    %144 = vector.multi_reduction <add>, %143, %cst_23 [1] : vector<32x8xf32> to vector<32xf32>
    %145 = vector.shape_cast %144 : vector<32xf32> to vector<32x1xf32>
    %146 = arith.mulf %139, %25 : vector<32x8xf32>
    %cst_24 = arith.constant dense<0.000000e+00> : vector<32xf32>
    %147 = vector.multi_reduction <add>, %146, %cst_24 [1] : vector<32x8xf32> to vector<32xf32>
    %148 = vector.shape_cast %147 : vector<32xf32> to vector<32x1xf32>
    %149 = arith.mulf %139, %33 : vector<32x8xf32>
    %cst_25 = arith.constant dense<0.000000e+00> : vector<32xf32>
    %150 = vector.multi_reduction <add>, %149, %cst_25 [1] : vector<32x8xf32> to vector<32xf32>
    %151 = vector.shape_cast %150 : vector<32xf32> to vector<32x1xf32>
    %152 = arith.mulf %139, %60 : vector<32x8xf32>
    %cst_26 = arith.constant dense<0.000000e+00> : vector<32xf32>
    %153 = vector.multi_reduction <add>, %152, %cst_26 [1] : vector<32x8xf32> to vector<32xf32>
    %154 = vector.shape_cast %153 : vector<32xf32> to vector<32x1xf32>
    %155 = vector.extract_strided_slice %64 {offsets = [0, 10], sizes = [32, 1], strides = [1, 1]} : vector<32x15xf32> to vector<32x1xf32>
    %156 = vector.broadcast %155 : vector<32x1xf32> to vector<32x8xf32>
    %157 = arith.mulf %156, %61 : vector<32x8xf32>
    %158 = vector.extract_strided_slice %64 {offsets = [0, 11], sizes = [32, 1], strides = [1, 1]} : vector<32x15xf32> to vector<32x1xf32>
    %159 = vector.broadcast %158 : vector<32x1xf32> to vector<32x8xf32>
    %160 = arith.mulf %159, %62 : vector<32x8xf32>
    %161 = arith.addf %157, %160 : vector<32x8xf32>
    %162 = vector.extract_strided_slice %64 {offsets = [0, 12], sizes = [32, 1], strides = [1, 1]} : vector<32x15xf32> to vector<32x1xf32>
    %163 = vector.broadcast %162 : vector<32x1xf32> to vector<32x8xf32>
    %164 = arith.mulf %163, %25 : vector<32x8xf32>
    %165 = arith.addf %161, %164 : vector<32x8xf32>
    %166 = vector.extract_strided_slice %64 {offsets = [0, 13], sizes = [32, 1], strides = [1, 1]} : vector<32x15xf32> to vector<32x1xf32>
    %167 = vector.broadcast %166 : vector<32x1xf32> to vector<32x8xf32>
    %168 = arith.mulf %167, %33 : vector<32x8xf32>
    %169 = arith.addf %165, %168 : vector<32x8xf32>
    %170 = vector.extract_strided_slice %64 {offsets = [0, 14], sizes = [32, 1], strides = [1, 1]} : vector<32x15xf32> to vector<32x1xf32>
    %171 = vector.broadcast %170 : vector<32x1xf32> to vector<32x8xf32>
    %172 = arith.mulf %171, %60 : vector<32x8xf32>
    %173 = arith.addf %169, %172 : vector<32x8xf32>
    %174 = arith.addf %173, %43 : vector<32x8xf32>
    %cst_27 = arith.constant dense<0xFF800000> : vector<32xf32>
    %175 = vector.multi_reduction <maximumf>, %174, %cst_27 [1] : vector<32x8xf32> to vector<32xf32>
    %176 = vector.shape_cast %175 : vector<32xf32> to vector<32x1xf32>
    %177 = vector.broadcast %176 : vector<32x1xf32> to vector<32x8xf32>
    %178 = arith.subf %174, %177 : vector<32x8xf32>
    %179 = math.exp %178 : vector<32x8xf32>
    %cst_28 = arith.constant dense<0.000000e+00> : vector<32xf32>
    %180 = vector.multi_reduction <add>, %179, %cst_28 [1] : vector<32x8xf32> to vector<32xf32>
    %181 = vector.shape_cast %180 : vector<32xf32> to vector<32x1xf32>
    %182 = tpu.reciprocal %181 {approx = true} : vector<32x1xf32> -> vector<32x1xf32>
    %183 = vector.broadcast %182 : vector<32x1xf32> to vector<32x8xf32>
    %184 = arith.mulf %179, %183 : vector<32x8xf32>
    %185 = arith.mulf %184, %61 : vector<32x8xf32>
    %cst_29 = arith.constant dense<0.000000e+00> : vector<32xf32>
    %186 = vector.multi_reduction <add>, %185, %cst_29 [1] : vector<32x8xf32> to vector<32xf32>
    %187 = vector.shape_cast %186 : vector<32xf32> to vector<32x1xf32>
    %188 = arith.mulf %184, %62 : vector<32x8xf32>
    %cst_30 = arith.constant dense<0.000000e+00> : vector<32xf32>
    %189 = vector.multi_reduction <add>, %188, %cst_30 [1] : vector<32x8xf32> to vector<32xf32>
    %190 = vector.shape_cast %189 : vector<32xf32> to vector<32x1xf32>
    %191 = arith.mulf %184, %25 : vector<32x8xf32>
    %cst_31 = arith.constant dense<0.000000e+00> : vector<32xf32>
    %192 = vector.multi_reduction <add>, %191, %cst_31 [1] : vector<32x8xf32> to vector<32xf32>
    %193 = vector.shape_cast %192 : vector<32xf32> to vector<32x1xf32>
    %194 = arith.mulf %184, %33 : vector<32x8xf32>
    %cst_32 = arith.constant dense<0.000000e+00> : vector<32xf32>
    %195 = vector.multi_reduction <add>, %194, %cst_32 [1] : vector<32x8xf32> to vector<32xf32>
    %196 = vector.shape_cast %195 : vector<32xf32> to vector<32x1xf32>
    %197 = arith.mulf %184, %60 : vector<32x8xf32>
    %cst_33 = arith.constant dense<0.000000e+00> : vector<32xf32>
    %198 = vector.multi_reduction <add>, %197, %cst_33 [1] : vector<32x8xf32> to vector<32xf32>
    %199 = vector.shape_cast %198 : vector<32xf32> to vector<32x1xf32>
    %200 = tpu.concatenate %97, %100, %103, %106, %109, %142, %145, %148, %151, %154, %187, %190, %193, %196, %199 in 1 : vector<32x1xf32>, vector<32x1xf32>, vector<32x1xf32>, vector<32x1xf32>, vector<32x1xf32>, vector<32x1xf32>, vector<32x1xf32>, vector<32x1xf32>, vector<32x1xf32>, vector<32x1xf32>, vector<32x1xf32>, vector<32x1xf32>, vector<32x1xf32>, vector<32x1xf32>, vector<32x1xf32> -> vector<32x15xf32>
    %c0_34 = arith.constant 0 : index
    %c0_35 = arith.constant 0 : index
    %201 = vector.load %arg4[%c0_34, %c0_35] : memref<15x32xf32, #tpu.memory_space<vmem>>, vector<15x32xf32>
    %cst_36 = arith.constant dense<0.000000e+00> : vector<32x32xf32>
    %202 = tpu.matmul %200, %201, %cst_36 {dimension_numbers = #tpu.dot_dimension_numbers<[1], [0], [0], [1], [0, 0, 1, 1], [], []>} : vector<32x15xf32>, vector<15x32xf32>, vector<32x32xf32> -> vector<32x32xf32>
    %c0_37 = arith.constant 0 : index
    %c0_38 = arith.constant 0 : index
    %203 = vector.load %arg5[%c0_37, %c0_38] : memref<8x32xf32, #tpu.memory_space<vmem>>, vector<8x32xf32>
    %cst_39 = arith.constant dense<0.000000e+00> : vector<32x32xf32>
    %204 = tpu.matmul %0, %203, %cst_39 {dimension_numbers = #tpu.dot_dimension_numbers<[1], [0], [0], [1], [0, 0, 1, 1], [], []>} : vector<32x8xf32>, vector<8x32xf32>, vector<32x32xf32> -> vector<32x32xf32>
    %205 = arith.addf %202, %204 : vector<32x32xf32>
    %c0_40 = arith.constant 0 : index
    %c0_41 = arith.constant 0 : index
    %206 = vector.load %arg6[%c0_40, %c0_41] : memref<1x32xf32, #tpu.memory_space<vmem>>, vector<1x32xf32>
    %207 = vector.broadcast %206 : vector<1x32xf32> to vector<32x32xf32>
    %208 = arith.addf %205, %207 : vector<32x32xf32>
    %cst_42 = arith.constant 0.000000e+00 : f32
    %209 = vector.broadcast %cst_42 : f32 to vector<32x32xf32>
    %210 = arith.maximumf %208, %209 : vector<32x32xf32>
    %c0_43 = arith.constant 0 : index
    %c0_44 = arith.constant 0 : index
    %211 = vector.load %arg7[%c0_43, %c0_44] : memref<32x32xf32, #tpu.memory_space<vmem>>, vector<32x32xf32>
    %cst_45 = arith.constant dense<0.000000e+00> : vector<32x32xf32>
    %212 = tpu.matmul %210, %211, %cst_45 {dimension_numbers = #tpu.dot_dimension_numbers<[1], [0], [0], [1], [0, 0, 1, 1], [], []>} : vector<32x32xf32>, vector<32x32xf32>, vector<32x32xf32> -> vector<32x32xf32>
    %c0_46 = arith.constant 0 : index
    %c0_47 = arith.constant 0 : index
    %213 = vector.load %arg8[%c0_46, %c0_47] : memref<1x32xf32, #tpu.memory_space<vmem>>, vector<1x32xf32>
    %214 = vector.broadcast %213 : vector<1x32xf32> to vector<32x32xf32>
    %215 = arith.addf %212, %214 : vector<32x32xf32>
    %cst_48 = arith.constant 0.000000e+00 : f32
    %216 = vector.broadcast %cst_48 : f32 to vector<32x32xf32>
    %217 = arith.maximumf %215, %216 : vector<32x32xf32>
    %c0_49 = arith.constant 0 : index
    %c0_50 = arith.constant 0 : index
    %218 = vector.load %arg9[%c0_49, %c0_50] : memref<1x32xf32, #tpu.memory_space<vmem>>, vector<1x32xf32>
    %cst_51 = arith.constant dense<0.000000e+00> : vector<1x32xf32>
    %219 = tpu.matmul %218, %217, %cst_51 {dimension_numbers = #tpu.dot_dimension_numbers<[1], [1], [0], [0], [0, 0, 1, 0], [], []>} : vector<1x32xf32>, vector<32x32xf32>, vector<1x32xf32> -> vector<1x32xf32>
    %c0_52 = arith.constant 0 : index
    %c0_53 = arith.constant 0 : index
    %220 = vector.load %arg10[%c0_52, %c0_53] : memref<1x1xf32, #tpu.memory_space<vmem>>, vector<1x1xf32>
    %221 = vector.broadcast %220 : vector<1x1xf32> to vector<1x32xf32>
    %222 = arith.addf %219, %221 : vector<1x32xf32>
    %c0_54 = arith.constant 0 : index
    %c0_55 = arith.constant 0 : index
    %c0_56 = arith.constant 0 : index
    %223 = vector.load %arg11[%c0_54, %c0_55, %c0_56] : memref<1x1x32xf32, #tpu.memory_space<vmem>>, vector<1x1x32xf32>
    %224 = vector.shape_cast %223 : vector<1x1x32xf32> to vector<1x32xf32>
    %225 = vector.shape_cast %222 : vector<1x32xf32> to vector<1x1x32xf32>
    tpu.vector_store %arg11[%c0_54, %c0_55, %c0_56], %225 {strides = array<i32>} : memref<1x1x32xf32, #tpu.memory_space<vmem>>, vector<1x1x32xf32>,
    return
  }
  func.func @transform_0(%arg0: i32) -> (i32, i32) {
    %c0_i32 = arith.constant 0 : i32
    %c0_i32_0 = arith.constant 0 : i32
    return %arg0, %c0_i32 : i32, i32
  }
  func.func @transform_1(%arg0: i32) -> (i32, i32, i32) {
    %c0_i32 = arith.constant 0 : i32
    %c0_i32_0 = arith.constant 0 : i32
    %c0_i32_1 = arith.constant 0 : i32
    return %arg0, %c0_i32, %c0_i32_0 : i32, i32, i32
  }
  func.func @transform_2(%arg0: i32) -> (i32, i32) {
    %c0_i32 = arith.constant 0 : i32
    %c0_i32_0 = arith.constant 0 : i32
    %c0_i32_1 = arith.constant 0 : i32
    return %c0_i32, %c0_i32_0 : i32, i32
  }
  func.func @transform_3(%arg0: i32) -> (i32, i32) {
    %c0_i32 = arith.constant 0 : i32
    %c0_i32_0 = arith.constant 0 : i32
    %c0_i32_1 = arith.constant 0 : i32
    return %c0_i32, %c0_i32_0 : i32, i32
  }
  func.func @transform_4(%arg0: i32) -> (i32, i32) {
    %c0_i32 = arith.constant 0 : i32
    %c0_i32_0 = arith.constant 0 : i32
    %c0_i32_1 = arith.constant 0 : i32
    return %c0_i32, %c0_i32_0 : i32, i32
  }
  func.func @transform_5(%arg0: i32) -> (i32, i32) {
    %c0_i32 = arith.constant 0 : i32
    %c0_i32_0 = arith.constant 0 : i32
    %c0_i32_1 = arith.constant 0 : i32
    return %c0_i32, %c0_i32_0 : i32, i32
  }
  func.func @transform_6(%arg0: i32) -> (i32, i32) {
    %c0_i32 = arith.constant 0 : i32
    %c0_i32_0 = arith.constant 0 : i32
    %c0_i32_1 = arith.constant 0 : i32
    return %c0_i32, %c0_i32_0 : i32, i32
  }
  func.func @transform_7(%arg0: i32) -> (i32, i32) {
    %c0_i32 = arith.constant 0 : i32
    %c0_i32_0 = arith.constant 0 : i32
    %c0_i32_1 = arith.constant 0 : i32
    return %c0_i32, %c0_i32_0 : i32, i32
  }
  func.func @transform_8(%arg0: i32) -> (i32, i32) {
    %c0_i32 = arith.constant 0 : i32
    %c0_i32_0 = arith.constant 0 : i32
    %c0_i32_1 = arith.constant 0 : i32
    return %c0_i32, %c0_i32_0 : i32, i32
  }
  func.func @transform_9(%arg0: i32) -> (i32, i32) {
    %c0_i32 = arith.constant 0 : i32
    %c0_i32_0 = arith.constant 0 : i32
    %c0_i32_1 = arith.constant 0 : i32
    return %c0_i32, %c0_i32_0 : i32, i32
  }
  func.func @transform_10(%arg0: i32) -> (i32, i32, i32) {
    %c0_i32 = arith.constant 0 : i32
    %c0_i32_0 = arith.constant 0 : i32
    %c0_i32_1 = arith.constant 0 : i32
    return %arg0, %c0_i32, %c0_i32_0 : i32, i32, i32
  }
}

</mosaic_0001>

<llo_original>
// kernel: tpu_custom_call.1
$region0: #{tpu_custom_call.1}
  #allocation0 [shape = 'u32[]', space=smem, size = 0x4, offset = 0x4, fixed_abs, tag = 'smem constant byte address 0x4 - core index']
  #allocation1 [shape = 'u32[144,128]{1,0:T(1,128)}', space=vmem, size = 0x12000, scoped, tag = 'internal scratch']
  #allocation2 [shape = 'f32[1,1]{1,0:T(1,128)S(1)}', space=vmem, size = 0x200, scoped, tag = 'scoped memory for tpu_custom_call.1']
  %s0 = inlined_call_operand.vmem [shape: f32[64,8], index: 0, kind: input, shape index: {}]
  %s1 = inlined_call_operand.vmem [shape: f32[8,4,8], index: 1, kind: input, shape index: {}]
  %s2 = inlined_call_operand.hbm [shape: f32[8,15], index: 2, kind: input, shape index: {}]
  %s3 = inlined_call_operand.vmem [shape: f32[15,32], index: 3, kind: input, shape index: {}]
  %s4 = inlined_call_operand.vmem [shape: f32[8,32], index: 4, kind: input, shape index: {}]
  %s5 = inlined_call_operand.vmem [shape: f32[1,32], index: 5, kind: input, shape index: {}]
  %s6 = inlined_call_operand.vmem [shape: f32[32,32], index: 6, kind: input, shape index: {}]
  %s7 = inlined_call_operand.vmem [shape: f32[1,32], index: 7, kind: input, shape index: {}]
  %s8 = inlined_call_operand.vmem [shape: f32[1,32], index: 8, kind: input, shape index: {}]
  %s9 = inlined_call_operand.<no memory space> [shape: f32[1,1], index: 9, kind: input, shape index: {}]
  %s10 = inlined_call_operand.hbm [shape: f32[2,1,32], index: 10, kind: output, shape index: {}]
  %s11 = sld [smem:[#allocation0]]
  $region77: #{tpu_custom_call.1} parent=0
    _
  %s13 = ssub.s32 1, %s11
  %s14 = scalar_select 0, %s13, %s11
  %v15 = vstv %s9
  %16 = vst [vmem:[#allocation2] sm:$0x1] %v15
  $region1: #{tpu_custom_call.1} parent=0
    #allocation3 [shape = 'u8[4096]{0}', space=vmem, size = 0x1000, scoped, tag = 'input window, operand 2, single buffered']
    #allocation4 [shape = 's32[2]{0}', space=sflag, size = 0x8, scoped, tag = 'scoped memory for tpu_custom_call.1']
    #allocation5 [shape = 's32[2]{0}', space=sflag, size = 0x8, scoped, tag = 'scoped memory for tpu_custom_call.1']
    #allocation6 [shape = 'u8[1024]{0}', space=vmem, size = 0x400, scoped, tag = 'output window, operand 0']
    %17 = vsyncpa [#allocation4], 0
    %18 = vsyncpa [#allocation5], 0
    %s19 = scalar_lea.sflag [#allocation5], 1
    %20 = vsyncpa %s19, 0
    loop: start=0, step=1, limit=4
    $region2: #{tpu_custom_call.1} parent=1 // loop_pre_header
      _
    $region3: #{tpu_custom_call.1} parent=1 // loop_header
      %s22 = sphi 0, %s26
      %p23 = scmp.ge.s32.totalorder %s22, 4
      %s32 = sphi 0, %s34
      %s35 = sphi 0, %s32
      %s36 = sphi 0, %s35
      %s52 = sphi 0, %s36
      %s58 = sphi 0, %s60
      %s61 = sphi 0, %s58
      %s62 = sphi 0, %s61
      %s78 = sphi 0, %s62
      %s82 = sphi 0, %s82
      %s84 = sphi 0, %s82
      %s85 = sphi 0, %s84
      %s99 = sphi 0, %s85
      %s103 = sphi 0, %s103
      %s105 = sphi 0, %s103
      %s106 = sphi 0, %s105
      %s120 = sphi 0, %s106
      %s124 = sphi 0, %s124
      %s126 = sphi 0, %s124
      %s127 = sphi 0, %s126
      %s141 = sphi 0, %s127
      %s145 = sphi 0, %s145
      %s147 = sphi 0, %s145
      %s148 = sphi 0, %s147
      %s162 = sphi 0, %s148
      %s166 = sphi 0, %s166
      %s168 = sphi 0, %s166
      %s169 = sphi 0, %s168
      %s183 = sphi 0, %s169
      %s187 = sphi 0, %s187
      %s189 = sphi 0, %s187
      %s190 = sphi 0, %s189
      %s204 = sphi 0, %s190
      %s208 = sphi 0, %s208
      %s210 = sphi 0, %s208
      %s211 = sphi 0, %s210
      %s225 = sphi 0, %s211
      %s229 = sphi 0, %s229
      %s231 = sphi 0, %s229
      %s232 = sphi 0, %s231
      %s246 = sphi 0, %s232
      %s252 = sphi 0, %s254
      %s255 = sphi 0, %s252
      %s256 = sphi 0, %s255
      %s272 = sphi 0, %s256
    $region4: #{tpu_custom_call.1} parent=1 // loop_header_branch
      %25 = sbr.rel (%p23) target = $region8
    $region5: #{tpu_custom_call.1} parent=1 // loop_body
      %s27 = ssub.s32 %s22, 1
      %s28 = ssub.s32 %s22, 2
      %s29 = sadd.s32 %s22, 1
      %s30 = ssub.s32 %s22, %s29
      %p31 = scmp.eq.s32.totalorder %s30, 0
      %s33 = sadd.s32 %s32, 1
      %s34 = scalar_select %p31, %s32, %s33
      %p37 = pneg %p31
      %p38 = scmp.eq.s32.totalorder %s22, 1
      %p39 = por %p37, %p38
      %p40 = scmp.ne.s32.totalorder %s32, %s35
      %p41 = scmp.eq.s32.totalorder %s22, 0
      %p42 = por %p40, %p41
      %p43 = scmp.ne.s32.totalorder %s32, %s35
      %p44 = scmp.eq.s32.totalorder %s27, 1
      %p45 = por %p43, %p44
      %p46 = scmp.ne.s32.totalorder %s35, %s36
      %p47 = scmp.eq.s32.totalorder %s27, 0
      %p48 = por %p46, %p47
      %p49 = scmp.ne.s32.totalorder %s35, %s36
      %p50 = scmp.eq.s32.totalorder %s28, 1
      %p51 = por %p49, %p50
      %p53 = scmp.ne.s32.totalorder %s36, %s52
      %p54 = scmp.eq.s32.totalorder %s28, 0
      %p55 = por %p53, %p54
      %s56 = ssub.s32 %s22, %s29
      %p57 = scmp.eq.s32.totalorder %s56, 0
      %s59 = sadd.s32 %s58, 1
      %s60 = scalar_select %p57, %s58, %s59
      %p63 = pneg %p57
      %p64 = scmp.eq.s32.totalorder %s22, 1
      %p65 = por %p63, %p64
      %p66 = scmp.ne.s32.totalorder %s58, %s61
      %p67 = scmp.eq.s32.totalorder %s22, 0
      %p68 = por %p66, %p67
      %p69 = scmp.ne.s32.totalorder %s58, %s61
      %p70 = scmp.eq.s32.totalorder %s27, 1
      %p71 = por %p69, %p70
      %p72 = scmp.ne.s32.totalorder %s61, %s62
      %p73 = scmp.eq.s32.totalorder %s27, 0
      %p74 = por %p72, %p73
      %p75 = scmp.ne.s32.totalorder %s61, %s62
      %p76 = scmp.eq.s32.totalorder %s28, 1
      %p77 = por %p75, %p76
      %p79 = scmp.ne.s32.totalorder %s62, %s78
      %p80 = scmp.eq.s32.totalorder %s28, 0
      %p81 = por %p79, %p80
      %s83 = sadd.s32 %s82, 1
      %p86 = scmp.eq.s32.totalorder %s22, 1
      %p87 = scmp.ne.s32.totalorder %s82, %s84
      %p88 = scmp.eq.s32.totalorder %s22, 0
      %p89 = por %p87, %p88
      %p90 = scmp.ne.s32.totalorder %s82, %s84
      %p91 = scmp.eq.s32.totalorder %s27, 1
      %p92 = por %p90, %p91
      %p93 = scmp.ne.s32.totalorder %s84, %s85
      %p94 = scmp.eq.s32.totalorder %s27, 0
      %p95 = por %p93, %p94
      %p96 = scmp.ne.s32.totalorder %s84, %s85
      %p97 = scmp.eq.s32.totalorder %s28, 1
      %p98 = por %p96, %p97
      %p100 = scmp.ne.s32.totalorder %s85, %s99
      %p101 = scmp.eq.s32.totalorder %s28, 0
      %p102 = por %p100, %p101
      %s104 = sadd.s32 %s103, 1
      %p107 = scmp.eq.s32.totalorder %s22, 1
      %p108 = scmp.ne.s32.totalorder %s103, %s105
      %p109 = scmp.eq.s32.totalorder %s22, 0
      %p110 = por %p108, %p109
      %p111 = scmp.ne.s32.totalorder %s103, %s105
      %p112 = scmp.eq.s32.totalorder %s27, 1
      %p113 = por %p111, %p112
      %p114 = scmp.ne.s32.totalorder %s105, %s106
      %p115 = scmp.eq.s32.totalorder %s27, 0
      %p116 = por %p114, %p115
      %p117 = scmp.ne.s32.totalorder %s105, %s106
      %p118 = scmp.eq.s32.totalorder %s28, 1
      %p119 = por %p117, %p118
      %p121 = scmp.ne.s32.totalorder %s106, %s120
      %p122 = scmp.eq.s32.totalorder %s28, 0
      %p123 = por %p121, %p122
      %s125 = sadd.s32 %s124, 1
      %p128 = scmp.eq.s32.totalorder %s22, 1
      %p129 = scmp.ne.s32.totalorder %s124, %s126
      %p130 = scmp.eq.s32.totalorder %s22, 0
      %p131 = por %p129, %p130
      %p132 = scmp.ne.s32.totalorder %s124, %s126
      %p133 = scmp.eq.s32.totalorder %s27, 1
      %p134 = por %p132, %p133
      %p135 = scmp.ne.s32.totalorder %s126, %s127
      %p136 = scmp.eq.s32.totalorder %s27, 0
      %p137 = por %p135, %p136
      %p138 = scmp.ne.s32.totalorder %s126, %s127
      %p139 = scmp.eq.s32.totalorder %s28, 1
      %p140 = por %p138, %p139
      %p142 = scmp.ne.s32.totalorder %s127, %s141
      %p143 = scmp.eq.s32.totalorder %s28, 0
      %p144 = por %p142, %p143
      %s146 = sadd.s32 %s145, 1
      %p149 = scmp.eq.s32.totalorder %s22, 1
      %p150 = scmp.ne.s32.totalorder %s145, %s147
      %p151 = scmp.eq.s32.totalorder %s22, 0
      %p152 = por %p150, %p151
      %p153 = scmp.ne.s32.totalorder %s145, %s147
      %p154 = scmp.eq.s32.totalorder %s27, 1
      %p155 = por %p153, %p154
      %p156 = scmp.ne.s32.totalorder %s147, %s148
      %p157 = scmp.eq.s32.totalorder %s27, 0
      %p158 = por %p156, %p157
      %p159 = scmp.ne.s32.totalorder %s147, %s148
      %p160 = scmp.eq.s32.totalorder %s28, 1
      %p161 = por %p159, %p160
      %p163 = scmp.ne.s32.totalorder %s148, %s162
      %p164 = scmp.eq.s32.totalorder %s28, 0
      %p165 = por %p163, %p164
      %s167 = sadd.s32 %s166, 1
      %p170 = scmp.eq.s32.totalorder %s22, 1
      %p171 = scmp.ne.s32.totalorder %s166, %s168
      %p172 = scmp.eq.s32.totalorder %s22, 0
      %p173 = por %p171, %p172
      %p174 = scmp.ne.s32.totalorder %s166, %s168
      %p175 = scmp.eq.s32.totalorder %s27, 1
      %p176 = por %p174, %p175
      %p177 = scmp.ne.s32.totalorder %s168, %s169
      %p178 = scmp.eq.s32.totalorder %s27, 0
      %p179 = por %p177, %p178
      %p180 = scmp.ne.s32.totalorder %s168, %s169
      %p181 = scmp.eq.s32.totalorder %s28, 1
      %p182 = por %p180, %p181
      %p184 = scmp.ne.s32.totalorder %s169, %s183
      %p185 = scmp.eq.s32.totalorder %s28, 0
      %p186 = por %p184, %p185
      %s188 = sadd.s32 %s187, 1
      %p191 = scmp.eq.s32.totalorder %s22, 1
      %p192 = scmp.ne.s32.totalorder %s187, %s189
      %p193 = scmp.eq.s32.totalorder %s22, 0
      %p194 = por %p192, %p193
      %p195 = scmp.ne.s32.totalorder %s187, %s189
      %p196 = scmp.eq.s32.totalorder %s27, 1
      %p197 = por %p195, %p196
      %p198 = scmp.ne.s32.totalorder %s189, %s190
      %p199 = scmp.eq.s32.totalorder %s27, 0
      %p200 = por %p198, %p199
      %p201 = scmp.ne.s32.totalorder %s189, %s190
      %p202 = scmp.eq.s32.totalorder %s28, 1
      %p203 = por %p201, %p202
      %p205 = scmp.ne.s32.totalorder %s190, %s204
      %p206 = scmp.eq.s32.totalorder %s28, 0
      %p207 = por %p205, %p206
      %s209 = sadd.s32 %s208, 1
      %p212 = scmp.eq.s32.totalorder %s22, 1
      %p213 = scmp.ne.s32.totalorder %s208, %s210
      %p214 = scmp.eq.s32.totalorder %s22, 0
      %p215 = por %p213, %p214
      %p216 = scmp.ne.s32.totalorder %s208, %s210
      %p217 = scmp.eq.s32.totalorder %s27, 1
      %p218 = por %p216, %p217
      %p219 = scmp.ne.s32.totalorder %s210, %s211
      %p220 = scmp.eq.s32.totalorder %s27, 0
      %p221 = por %p219, %p220
      %p222 = scmp.ne.s32.totalorder %s210, %s211
      %p223 = scmp.eq.s32.totalorder %s28, 1
      %p224 = por %p222, %p223
      %p226 = scmp.ne.s32.totalorder %s211, %s225
      %p227 = scmp.eq.s32.totalorder %s28, 0
      %p228 = por %p226, %p227
      %s230 = sadd.s32 %s229, 1
      %p233 = scmp.eq.s32.totalorder %s22, 1
      %p234 = scmp.ne.s32.totalorder %s229, %s231
      %p235 = scmp.eq.s32.totalorder %s22, 0
      %p236 = por %p234, %p235
      %p237 = scmp.ne.s32.totalorder %s229, %s231
      %p238 = scmp.eq.s32.totalorder %s27, 1
      %p239 = por %p237, %p238
      %p240 = scmp.ne.s32.totalorder %s231, %s232
      %p241 = scmp.eq.s32.totalorder %s27, 0
      %p242 = por %p240, %p241
      %p243 = scmp.ne.s32.totalorder %s231, %s232
      %p244 = scmp.eq.s32.totalorder %s28, 1
      %p245 = por %p243, %p244
      %p247 = scmp.ne.s32.totalorder %s232, %s246
      %p248 = scmp.eq.s32.totalorder %s28, 0
      %p249 = por %p247, %p248
      %s250 = ssub.s32 %s22, %s29
      %p251 = scmp.eq.s32.totalorder %s250, 0
      %s253 = sadd.s32 %s252, 1
      %s254 = scalar_select %p251, %s252, %s253
      %p257 = pneg %p251
      %p258 = scmp.eq.s32.totalorder %s22, 1
      %p259 = por %p257, %p258
      %p260 = scmp.ne.s32.totalorder %s252, %s255
      %p261 = scmp.eq.s32.totalorder %s22, 0
      %p262 = por %p260, %p261
      %p263 = scmp.ne.s32.totalorder %s252, %s255
      %p264 = scmp.eq.s32.totalorder %s27, 1
      %p265 = por %p263, %p264
      %p266 = scmp.ne.s32.totalorder %s255, %s256
      %p267 = scmp.eq.s32.totalorder %s27, 0
      %p268 = por %p266, %p267
      %p269 = scmp.ne.s32.totalorder %s255, %s256
      %p270 = scmp.eq.s32.totalorder %s28, 1
      %p271 = por %p269, %p270
      %p273 = scmp.ne.s32.totalorder %s256, %s272
      %p274 = scmp.eq.s32.totalorder %s28, 0
      %p275 = por %p273, %p274
      %p276 = scmp.le.s32.totalorder 1, %s22
      %p277 = scmp.lt.s32.totalorder %s22, 3
      %p278 = pnand %p276, %p277
      %p279 = pneg %p278
      // Predicated region
      $region9: #{tpu_custom_call.1} parent=5 // pred_check
        _
      $region10: #{tpu_custom_call.1} parent=5 // pred_check_branch
        %281 = sbr.rel (%p278) target = $region12
      $region11: #{tpu_custom_call.1} parent=5 // pred_region
        %s282 = ssub.s32 %s22, 1
        // Predicated region
        $region13: #{tpu_custom_call.1} parent=11 // pred_check
          %p283 = pneg %p95
        $region14: #{tpu_custom_call.1} parent=11 // pred_check_branch
          %285 = sbr.rel (%p283) target = $region16
        $region15: #{tpu_custom_call.1} parent=11 // pred_region
          %s287 = ssub.s32 128, 128
          %288 = vsyncadd [#allocation4], %s287
          %s290 = sshll.u32 [#allocation3], 4
          %s291 = int_to_ptr.vmem [resolvable:$true] %s290
          %293 = dma.hbm_to_vmem [thread:$0]  %s2, 128, %s291, [#allocation4]
        $region16: #{tpu_custom_call.1} parent=11 // pred_fallthru
          _
        // Predicated region
        $region17: #{tpu_custom_call.1} parent=11 // pred_check
          %p294 = pneg %p116
        $region18: #{tpu_custom_call.1} parent=11 // pred_check_branch
          %296 = sbr.rel (%p294) target = $region20
        $region19: #{tpu_custom_call.1} parent=11 // pred_region
          _
        $region20: #{tpu_custom_call.1} parent=11 // pred_fallthru
          _
        // Predicated region
        $region21: #{tpu_custom_call.1} parent=11 // pred_check
          %p297 = pneg %p137
        $region22: #{tpu_custom_call.1} parent=11 // pred_check_branch
          %299 = sbr.rel (%p297) target = $region24
        $region23: #{tpu_custom_call.1} parent=11 // pred_region
          _
        $region24: #{tpu_custom_call.1} parent=11 // pred_fallthru
          _
        // Predicated region
        $region25: #{tpu_custom_call.1} parent=11 // pred_check
          %p300 = pneg %p158
        $region26: #{tpu_custom_call.1} parent=11 // pred_check_branch
          %302 = sbr.rel (%p300) target = $region28
        $region27: #{tpu_custom_call.1} parent=11 // pred_region
          _
        $region28: #{tpu_custom_call.1} parent=11 // pred_fallthru
          _
        // Predicated region
        $region29: #{tpu_custom_call.1} parent=11 // pred_check
          %p303 = pneg %p179
        $region30: #{tpu_custom_call.1} parent=11 // pred_check_branch
          %305 = sbr.rel (%p303) target = $region32
        $region31: #{tpu_custom_call.1} parent=11 // pred_region
          _
        $region32: #{tpu_custom_call.1} parent=11 // pred_fallthru
          _
        // Predicated region
        $region33: #{tpu_custom_call.1} parent=11 // pred_check
          %p306 = pneg %p200
        $region34: #{tpu_custom_call.1} parent=11 // pred_check_branch
          %308 = sbr.rel (%p306) target = $region36
        $region35: #{tpu_custom_call.1} parent=11 // pred_region
          _
        $region36: #{tpu_custom_call.1} parent=11 // pred_fallthru
          _
        // Predicated region
        $region37: #{tpu_custom_call.1} parent=11 // pred_check
          %p309 = pneg %p221
        $region38: #{tpu_custom_call.1} parent=11 // pred_check_branch
          %311 = sbr.rel (%p309) target = $region40
        $region39: #{tpu_custom_call.1} parent=11 // pred_region
          _
        $region40: #{tpu_custom_call.1} parent=11 // pred_fallthru
          _
        // Predicated region
        $region41: #{tpu_custom_call.1} parent=11 // pred_check
          %p312 = pneg %p242
        $region42: #{tpu_custom_call.1} parent=11 // pred_check_branch
          %314 = sbr.rel (%p312) target = $region44
        $region43: #{tpu_custom_call.1} parent=11 // pred_region
          _
        $region44: #{tpu_custom_call.1} parent=11 // pred_fallthru
          _
      $region12: #{tpu_custom_call.1} parent=5 // pred_fallthru
        _
      %p315 = scmp.lt.s32.totalorder %s22, 2
      // Predicated region
      $region45: #{tpu_custom_call.1} parent=5 // pred_check
        %p316 = pneg %p315
      $region46: #{tpu_custom_call.1} parent=5 // pred_check_branch
        %318 = sbr.rel (%p316) target = $region48
      $region47: #{tpu_custom_call.1} parent=5 // pred_region
        // Predicated region
        $region49: #{tpu_custom_call.1} parent=47 // pred_check
          %p319 = pneg %p42
        $region50: #{tpu_custom_call.1} parent=47 // pred_check_branch
          %321 = sbr.rel (%p319) target = $region52
        $region51: #{tpu_custom_call.1} parent=47 // pred_region
          %s322 = smul.u32 4, %s22
          %p323 = scmp.lt.s32.totalorder %s322, 7
          %s324 = scalar_select %p323, %s322, 7
          %s325 = smul.addr %s324, 8
          %s326 = scalar_lea.vmem %s0, %s325
          %s327 = smul.u32 4, %s22
        $region52: #{tpu_custom_call.1} parent=47 // pred_fallthru
          _
        // Predicated region
        $region53: #{tpu_custom_call.1} parent=47 // pred_check
          %p328 = pneg %p68
        $region54: #{tpu_custom_call.1} parent=47 // pred_check_branch
          %330 = sbr.rel (%p328) target = $region56
        $region55: #{tpu_custom_call.1} parent=47 // pred_region
          %s331 = smul.u32 4, %s22
          %p332 = scmp.lt.s32.totalorder %s331, 7
          %s333 = scalar_select %p332, %s331, 7
          %s334 = smul.addr %s333, 4
          %s335 = scalar_lea.vmem %s1, %s334
          %s336 = smul.u32 4, %s22
        $region56: #{tpu_custom_call.1} parent=47 // pred_fallthru
          _
      $region48: #{tpu_custom_call.1} parent=5 // pred_fallthru
        _
      %p337 = scmp.le.s32.totalorder 1, %s22
      %p338 = scmp.lt.s32.totalorder %s22, 3
      %p339 = pnand %p337, %p338
      %p340 = pneg %p339
      // Predicated region
      $region57: #{tpu_custom_call.1} parent=5 // pred_check
        _
      $region58: #{tpu_custom_call.1} parent=5 // pred_check_branch
        %342 = sbr.rel (%p339) target = $region60
      $region59: #{tpu_custom_call.1} parent=5 // pred_region
        %s343 = ssub.s32 %s22, 1
        // Predicated region
        $region61: #{tpu_custom_call.1} parent=59 // pred_check
          %p344 = pneg %p95
        $region62: #{tpu_custom_call.1} parent=59 // pred_check_branch
          %346 = sbr.rel (%p344) target = $region64
        $region63: #{tpu_custom_call.1} parent=59 // pred_region
          %347 = dma.done [#allocation4], 128
        $region64: #{tpu_custom_call.1} parent=59 // pred_fallthru
          _
        %s348 = smul.u32 4, %s27
        %p349 = scmp.lt.s32.totalorder %s348, 7
        %s350 = scalar_select %p349, %s348, 7
        %s351 = smul.addr %s350, 8
        %s352 = scalar_lea.vmem %s0, %s351
        %p353 = pneg %p48
        %p354 = pneg %p45
        %s355 = smul.u32 4, %s27
        %p356 = scmp.lt.s32.totalorder %s355, 7
        %s357 = scalar_select %p356, %s355, 7
        %s358 = smul.addr %s357, 4
        %s359 = scalar_lea.vmem %s1, %s358
        %p360 = pneg %p74
        %p361 = pneg %p71
        %p362 = pneg %p95
        %p363 = pneg %p92
        %p364 = pneg %p116
        %p365 = pneg %p113
        %p366 = pneg %p137
        %p367 = pneg %p134
        %p368 = pneg %p158
        %p369 = pneg %p155
        %p370 = pneg %p179
        %p371 = pneg %p176
        %p372 = pneg %p200
        %p373 = pneg %p197
        %p374 = pneg %p221
        %p375 = pneg %p218
        %p376 = pneg %p242
        %p377 = pneg %p239
        %p378 = pneg %p268
        %p379 = pneg %p265
        %s380 = sand.u32 %s255, 1
        %s381 = scalar_lea.sflag [#allocation5], %s380
        %s382 = sand.u32 %s255, 1
        %s383 = scalar_lea.vmem [#allocation6], %s382
        %s384 = smul.u32 4, %s27
        %p385 = scmp.lt.s32.totalorder %s384, 7
        %s386 = scalar_select %p385, %s384, 7
        %s387 = smul.addr %s386, 8
        %s388 = scalar_lea.vmem %s0, %s387
        %s389 = smul.u32 4, %s27
        %s390 = smul.u32 4, %s27
        %p391 = scmp.lt.s32.totalorder %s390, 7
        %s392 = scalar_select %p391, %s390, 7
        %s393 = smul.addr %s392, 4
        %s394 = scalar_lea.vmem %s1, %s393
        %s395 = smul.u32 4, %s27
        %v396 = vld [vmem:[%s388] sm:$0xff]
        %v397 = vld [vmem:[%s388 + $0x8] sm:$0xff]
        %v398 = vld [vmem:[%s388 + $0x10] sm:$0xff]
        %v399 = vld [vmem:[%s388 + $0x18] sm:$0xff]
        %v400 = vld [vmem:[%s394] sm:$0xf]
        %v401 = vld [vmem:[%s394 + $0x4] sm:$0xf]
        %v402 = vld [vmem:[%s394 + $0x8] sm:$0xf]
        %v403 = vld [vmem:[%s394 + $0xc] sm:$0xf]
        %v404 = vlaneseq
        %v405 = vshrl.u32 %v404, 7
        %v406 = vsub.s32 0, %v405
        %v407 = vrot.slane %v400, %v406
        %409 = vbcast.lane.b32.xlu0 %v407, 256
        %v410 = vpop.permute.xlu0 %409
        %v411 = vlaneseq
        %v412 = vshrl.u32 %v411, 7
        %v413 = vsub.s32 0, %v412
        %v414 = vrot.slane %v401, %v413
        %416 = vbcast.lane.b32.xlu0 %v414, 256
        %v417 = vpop.permute.xlu0 %416
        %v418 = vlaneseq
        %v419 = vshrl.u32 %v418, 7
        %v420 = vsub.s32 0, %v419
        %v421 = vrot.slane %v402, %v420
        %423 = vbcast.lane.b32.xlu0 %v421, 256
        %v424 = vpop.permute.xlu0 %423
        %v425 = vlaneseq
        %v426 = vshrl.u32 %v425, 7
        %v427 = vsub.s32 0, %v426
        %v428 = vrot.slane %v403, %v427
        %430 = vbcast.lane.b32.xlu0 %v428, 256
        %v431 = vpop.permute.xlu0 %430
        %v432 = vsub.f32 %v407, %v410
        %v433 = vsub.f32 %v414, %v417
        %v434 = vsub.f32 %v421, %v424
        %v435 = vsub.f32 %v428, %v431
        %v436 = vlaneseq
        %v437 = vshrl.u32 %v436, 7
        %v438 = vsub.s32 1, %v437
        %v439 = vrot.slane %v400, %v438
        %441 = vbcast.lane.b32.xlu0 %v439, 256
        %v442 = vpop.permute.xlu0 %441
        %v443 = vlaneseq
        %v444 = vshrl.u32 %v443, 7
        %v445 = vsub.s32 1, %v444
        %v446 = vrot.slane %v401, %v445
        %448 = vbcast.lane.b32.xlu0 %v446, 256
        %v449 = vpop.permute.xlu0 %448
        %v450 = vlaneseq
        %v451 = vshrl.u32 %v450, 7
        %v452 = vsub.s32 1, %v451
        %v453 = vrot.slane %v402, %v452
        %455 = vbcast.lane.b32.xlu0 %v453, 256
        %v456 = vpop.permute.xlu0 %455
        %v457 = vlaneseq
        %v458 = vshrl.u32 %v457, 7
        %v459 = vsub.s32 1, %v458
        %v460 = vrot.slane %v403, %v459
        %462 = vbcast.lane.b32.xlu0 %v460, 256
        %v463 = vpop.permute.xlu0 %462
        %v464 = vsub.f32 %v439, %v442
        %v465 = vsub.f32 %v446, %v449
        %v466 = vsub.f32 %v453, %v456
        %v467 = vsub.f32 %v460, %v463
        %v468 = vlaneseq
        %v469 = vshrl.u32 %v468, 7
        %v470 = vsub.s32 2, %v469
        %v471 = vrot.slane %v400, %v470
        %473 = vbcast.lane.b32.xlu0 %v471, 256
        %v474 = vpop.permute.xlu0 %473
        %v475 = vlaneseq
        %v476 = vshrl.u32 %v475, 7
        %v477 = vsub.s32 2, %v476
        %v478 = vrot.slane %v401, %v477
        %480 = vbcast.lane.b32.xlu0 %v478, 256
        %v481 = vpop.permute.xlu0 %480
        %v482 = vlaneseq
        %v483 = vshrl.u32 %v482, 7
        %v484 = vsub.s32 2, %v483
        %v485 = vrot.slane %v402, %v484
        %487 = vbcast.lane.b32.xlu0 %v485, 256
        %v488 = vpop.permute.xlu0 %487
        %v489 = vlaneseq
        %v490 = vshrl.u32 %v489, 7
        %v491 = vsub.s32 2, %v490
        %v492 = vrot.slane %v403, %v491
        %494 = vbcast.lane.b32.xlu0 %v492, 256
        %v495 = vpop.permute.xlu0 %494
        %v496 = vsub.f32 %v471, %v474
        %v497 = vsub.f32 %v478, %v481
        %v498 = vsub.f32 %v485, %v488
        %v499 = vsub.f32 %v492, %v495
        %v500 = vlaneseq
        %v501 = vshrl.u32 %v500, 7
        %v502 = vsub.s32 3, %v501
        %v503 = vrot.slane %v400, %v502
        %505 = vbcast.lane.b32.xlu0 %v503, 256
        %v506 = vpop.permute.xlu0 %505
        %v507 = vlaneseq
        %v508 = vshrl.u32 %v507, 7
        %v509 = vsub.s32 3, %v508
        %v510 = vrot.slane %v401, %v509
        %512 = vbcast.lane.b32.xlu0 %v510, 256
        %v513 = vpop.permute.xlu0 %512
        %v514 = vlaneseq
        %v515 = vshrl.u32 %v514, 7
        %v516 = vsub.s32 3, %v515
        %v517 = vrot.slane %v402, %v516
        %519 = vbcast.lane.b32.xlu0 %v517, 256
        %v520 = vpop.permute.xlu0 %519
        %v521 = vlaneseq
        %v522 = vshrl.u32 %v521, 7
        %v523 = vsub.s32 3, %v522
        %v524 = vrot.slane %v403, %v523
        %526 = vbcast.lane.b32.xlu0 %v524, 256
        %v527 = vpop.permute.xlu0 %526
        %v528 = vsub.f32 %v503, %v506
        %v529 = vsub.f32 %v510, %v513
        %v530 = vsub.f32 %v517, %v520
        %v531 = vsub.f32 %v524, %v527
        %v532 = vlaneseq
        %v533 = vshrl.u32 %v532, 7
        %v534 = vlaneseq
        %v535 = vand.u32 %v534, 127
        %vm536 = vcmp.eq.s32.totalorder %v533, %v535
        %v537 = vsel %vm536, -1e+30, 0.0
        %v538 = vmul.f32 %v432, %v432
        %v539 = vmul.f32 %v433, %v433
        %v540 = vmul.f32 %v434, %v434
        %v541 = vmul.f32 %v435, %v435
        %v542 = vmul.f32 %v464, %v464
        %v543 = vmul.f32 %v465, %v465
        %v544 = vmul.f32 %v466, %v466
        %v545 = vmul.f32 %v467, %v467
        %v546 = vadd.f32 %v538, %v542
        %v547 = vadd.f32 %v539, %v543
        %v548 = vadd.f32 %v540, %v544
        %v549 = vadd.f32 %v541, %v545
        %v550 = vrsqrt.pop %v546
        %v551 = vmul.f32 %v546, %v550
        %vm552 = vcmp.eq.f32.partialorder %v546, inf
        %v553 = vsel %vm552, %v546, %v551
        %vm554 = vcmp.eq.f32.partialorder %v546, 0.0
        %v555 = vand.u32 %v546, 2147483648
        %v556 = vsel %vm554, %v555, %v553
        %v557 = vrsqrt.pop %v547
        %v558 = vmul.f32 %v547, %v557
        %vm559 = vcmp.eq.f32.partialorder %v547, inf
        %v560 = vsel %vm559, %v547, %v558
        %vm561 = vcmp.eq.f32.partialorder %v547, 0.0
        %v562 = vand.u32 %v547, 2147483648
        %v563 = vsel %vm561, %v562, %v560
        %v564 = vrsqrt.pop %v548
        %v565 = vmul.f32 %v548, %v564
        %vm566 = vcmp.eq.f32.partialorder %v548, inf
        %v567 = vsel %vm566, %v548, %v565
        %vm568 = vcmp.eq.f32.partialorder %v548, 0.0
        %v569 = vand.u32 %v548, 2147483648
        %v570 = vsel %vm568, %v569, %v567
        %v571 = vrsqrt.pop %v549
        %v572 = vmul.f32 %v549, %v571
        %vm573 = vcmp.eq.f32.partialorder %v549, inf
        %v574 = vsel %vm573, %v549, %v572
        %vm575 = vcmp.eq.f32.partialorder %v549, 0.0
        %v576 = vand.u32 %v549, 2147483648
        %v577 = vsel %vm575, %v576, %v574
        %v578 = vsel %vm536, 1.0, %v556
        %v579 = vsel %vm536, 1.0, %v563
        %v580 = vsel %vm536, 1.0, %v570
        %v581 = vsel %vm536, 1.0, %v577
        %v582 = vrcp.pop %v578
        %v583 = vrcp.pop %v579
        %v584 = vrcp.pop %v580
        %v585 = vrcp.pop %v581
        %v586 = vsub.f32 %v556, 0.2
        %v587 = vsub.f32 %v563, 0.2
        %v588 = vsub.f32 %v570, 0.2
        %v589 = vsub.f32 %v577, 0.2
        %v590 = vmul.f32 %v586, 5.0
        %v591 = vmul.f32 %v587, 5.0
        %v592 = vmul.f32 %v588, 5.0
        %v593 = vmul.f32 %v589, 5.0
        %v594 = vsub.f32 %v590, 1.0
        %v595 = vsub.f32 %v591, 1.0
        %v596 = vsub.f32 %v592, 1.0
        %v597 = vsub.f32 %v593, 1.0
        %v598 = vmul.f32 %v594, 1.442695
        %v599 = vpow.pop %v598
        %v600 = vmul.f32 %v595, 1.442695
        %v601 = vpow.pop %v600
        %v602 = vmul.f32 %v596, 1.442695
        %v603 = vpow.pop %v602
        %v604 = vmul.f32 %v597, 1.442695
        %v605 = vpow.pop %v604
        %v606 = vadd.f32 %v599, 1.0
        %v607 = vadd.f32 %v601, 1.0
        %v608 = vadd.f32 %v603, 1.0
        %v609 = vadd.f32 %v605, 1.0
        %v610 = vrcp.pop %v606
        %v611 = vrcp.pop %v607
        %v612 = vrcp.pop %v608
        %v613 = vrcp.pop %v609
        %v614 = vmul.f32 %v432, %v582
        %v615 = vmul.f32 %v433, %v583
        %v616 = vmul.f32 %v434, %v584
        %v617 = vmul.f32 %v435, %v585
        %v618 = vmul.f32 %v464, %v582
        %v619 = vmul.f32 %v465, %v583
        %v620 = vmul.f32 %v466, %v584
        %v621 = vmul.f32 %v467, %v585
        %v622 = vld [vmem:[#allocation3] sm:$0xff]
        %vm623 = vcmask 64512
        %v625 = vsel %vm623, %v396, 0
        %v628 = vsel %vm623, %v397, 0
        %v631 = vsel %vm623, %v398, 0
        %v634 = vsel %vm623, %v399, 0
        %636 = vmatprep.subr.mxu0 0.0
        %637 = vmatpush1.msra.mxu0 %v622
        %638 = vmatprep.subr.mxu0 0.0
        %639 = vmatpush1.msra.mxu0 0.0
        %640 = vmatprep.subr.mxu0 0.0
        %641 = vmatpush1.msra.mxu0 0.0
        %642 = vmatprep.subr.mxu0 0.0
        %643 = vmatpush1.msra.mxu0 0.0
        %644 = vmatprep.subr.mxu0 0.0
        %645 = vmatpush1.msra.mxu0 0.0
        %646 = vmatprep.subr.mxu0 0.0
        %647 = vmatpush1.msra.mxu0 0.0
        %648 = vmatprep.subr.mxu0 0.0
        %649 = vmatpush1.msra.mxu0 0.0
        %650 = vmatprep.subr.mxu0 0.0
        %651 = vmatpush1.msra.mxu0 0.0
        %652 = vmatprep.subr.mxu0 0.0
        %653 = vmatpush1.msra.mxu0 0.0
        %654 = vmatprep.subr.mxu0 0.0
        %655 = vmatpush1.msra.mxu0 0.0
        %656 = vmatprep.subr.mxu0 0.0
        %657 = vmatpush1.msra.mxu0 0.0
        %658 = vmatprep.subr.mxu0 0.0
        %659 = vmatpush1.msra.mxu0 0.0
        %660 = vmatprep.subr.mxu0 0.0
        %661 = vmatpush1.msra.mxu0 0.0
        %662 = vmatprep.subr.mxu0 0.0
        %663 = vmatpush1.msra.mxu0 0.0
        %664 = vmatprep.subr.mxu0 0.0
        %665 = vmatpush1.msra.mxu0 0.0
        %666 = vmatprep.subr.mxu0 0.0
        %667 = vmatpush1.msra.mxu0 0.0
        %668 = vmatprep.subr.mxu0 0.0
        %669 = vmatpush1.msra.mxu0 0.0
        %670 = vmatprep.subr.mxu0 0.0
        %671 = vmatpush1.msra.mxu0 0.0
        %672 = vmatprep.subr.mxu0 0.0
        %673 = vmatpush1.msra.mxu0 0.0
        %674 = vmatprep.subr.mxu0 0.0
        %675 = vmatpush1.msra.mxu0 0.0
        %676 = vmatprep.subr.mxu0 0.0
        %677 = vmatpush1.msra.mxu0 0.0
        %678 = vmatprep.subr.mxu0 0.0
        %679 = vmatpush1.msra.mxu0 0.0
        %680 = vmatprep.subr.mxu0 0.0
        %681 = vmatpush1.msra.mxu0 0.0
        %682 = vmatprep.subr.mxu0 0.0
        %683 = vmatpush1.msra.mxu0 0.0
        %684 = vmatprep.subr.mxu0 0.0
        %685 = vmatpush1.msra.mxu0 0.0
        %686 = vmatprep.subr.mxu0 0.0
        %687 = vmatpush1.msra.mxu0 0.0
        %688 = vmatprep.subr.mxu0 0.0
        %689 = vmatpush1.msra.mxu0 0.0
        %690 = vmatprep.subr.mxu0 0.0
        %691 = vmatpush1.msra.mxu0 0.0
        %692 = vmatprep.subr.mxu0 0.0
        %693 = vmatpush1.msra.mxu0 0.0
        %694 = vmatprep.subr.mxu0 0.0
        %695 = vmatpush1.msra.mxu0 0.0
        %696 = vmatprep.subr.mxu0 0.0
        %697 = vmatpush1.msra.mxu0 0.0
        %698 = vmatprep.subr.mxu0 0.0
        %699 = vmatpush1.msra.mxu0 0.0
        %700 = vmatprep.mubr.f32.mxu0 0.0
        %701 = vmatmul.mubr.f32.gmra.mrb[0].mxu0 %v625
        %v702 = vpop.f32.mrb[0].mxu0
        %v703 = vadd.f32 0.0, %v702
        %v704 = vpop.f32.mrb[0].mxu0
        %705 = vmatprep.mubr.f32.mxu0 0.0
        %706 = vmatmul.mubr.f32.gmra.mrb[0].mxu0 %v628
        %v707 = vpop.f32.mrb[0].mxu0
        %v708 = vadd.f32 0.0, %v707
        %v709 = vpop.f32.mrb[0].mxu0
        %710 = vmatprep.mubr.f32.mxu0 0.0
        %711 = vmatmul.mubr.f32.gmra.mrb[0].mxu0 %v631
        %v712 = vpop.f32.mrb[0].mxu0
        %v713 = vadd.f32 0.0, %v712
        %v714 = vpop.f32.mrb[0].mxu0
        %715 = vmatprep.mubr.f32.mxu0 0.0
        %716 = vmatmul.mubr.f32.gmra.mrb[0].mxu0 %v634
        %v717 = vpop.f32.mrb[0].mxu0
        %v718 = vadd.f32 0.0, %v717
        %v719 = vpop.f32.mrb[0].mxu0
        %720 = vdwg.mxu0
        %722 = vset.pattern.permute.xlu0 0
        %723 = vperm.xlu0 %722, %v703
        %v724 = vpop.permute.xlu0 %723
        %727 = vset.pattern.permute.xlu0 0
        %728 = vperm.xlu0 %727, %v708
        %v729 = vpop.permute.xlu0 %728
        %732 = vset.pattern.permute.xlu0 0
        %733 = vperm.xlu0 %732, %v713
        %v734 = vpop.permute.xlu0 %733
        %737 = vset.pattern.permute.xlu0 0
        %738 = vperm.xlu0 %737, %v718
        %v739 = vpop.permute.xlu0 %738
        %v741 = vmul.f32 %v724, %v614
        %v742 = vmul.f32 %v729, %v615
        %v743 = vmul.f32 %v734, %v616
        %v744 = vmul.f32 %v739, %v617
        %745 = vset.pattern.permute.xlu0 1
        %746 = vperm.xlu0 %745, %v703
        %v747 = vpop.permute.xlu0 %746
        %749 = vset.pattern.permute.xlu0 1
        %750 = vperm.xlu0 %749, %v708
        %v751 = vpop.permute.xlu0 %750
        %753 = vset.pattern.permute.xlu0 1
        %754 = vperm.xlu0 %753, %v713
        %v755 = vpop.permute.xlu0 %754
        %757 = vset.pattern.permute.xlu0 1
        %758 = vperm.xlu0 %757, %v718
        %v759 = vpop.permute.xlu0 %758
        %v761 = vmul.f32 %v747, %v618
        %v762 = vmul.f32 %v751, %v619
        %v763 = vmul.f32 %v755, %v620
        %v764 = vmul.f32 %v759, %v621
        %v765 = vadd.f32 %v741, %v761
        %v766 = vadd.f32 %v742, %v762
        %v767 = vadd.f32 %v743, %v763
        %v768 = vadd.f32 %v744, %v764
        %769 = vset.pattern.permute.xlu0 2
        %770 = vperm.xlu0 %769, %v703
        %v771 = vpop.permute.xlu0 %770
        %773 = vset.pattern.permute.xlu0 2
        %774 = vperm.xlu0 %773, %v708
        %v775 = vpop.permute.xlu0 %774
        %777 = vset.pattern.permute.xlu0 2
        %778 = vperm.xlu0 %777, %v713
        %v779 = vpop.permute.xlu0 %778
        %781 = vset.pattern.permute.xlu0 2
        %782 = vperm.xlu0 %781, %v718
        %v783 = vpop.permute.xlu0 %782
        %v785 = vmul.f32 %v771, %v496
        %v786 = vmul.f32 %v775, %v497
        %v787 = vmul.f32 %v779, %v498
        %v788 = vmul.f32 %v783, %v499
        %v789 = vadd.f32 %v765, %v785
        %v790 = vadd.f32 %v766, %v786
        %v791 = vadd.f32 %v767, %v787
        %v792 = vadd.f32 %v768, %v788
        %793 = vset.pattern.permute.xlu0 3
        %794 = vperm.xlu0 %793, %v703
        %v795 = vpop.permute.xlu0 %794
        %797 = vset.pattern.permute.xlu0 3
        %798 = vperm.xlu0 %797, %v708
        %v799 = vpop.permute.xlu0 %798
        %801 = vset.pattern.permute.xlu0 3
        %802 = vperm.xlu0 %801, %v713
        %v803 = vpop.permute.xlu0 %802
        %805 = vset.pattern.permute.xlu0 3
        %806 = vperm.xlu0 %805, %v718
        %v807 = vpop.permute.xlu0 %806
        %v809 = vmul.f32 %v795, %v528
        %v810 = vmul.f32 %v799, %v529
        %v811 = vmul.f32 %v803, %v530
        %v812 = vmul.f32 %v807, %v531
        %v813 = vadd.f32 %v789, %v809
        %v814 = vadd.f32 %v790, %v810
        %v815 = vadd.f32 %v791, %v811
        %v816 = vadd.f32 %v792, %v812
        %817 = vset.pattern.permute.xlu0 4
        %818 = vperm.xlu0 %817, %v703
        %v819 = vpop.permute.xlu0 %818
        %821 = vset.pattern.permute.xlu0 4
        %822 = vperm.xlu0 %821, %v708
        %v823 = vpop.permute.xlu0 %822
        %825 = vset.pattern.permute.xlu0 4
        %826 = vperm.xlu0 %825, %v713
        %v827 = vpop.permute.xlu0 %826
        %829 = vset.pattern.permute.xlu0 4
        %830 = vperm.xlu0 %829, %v718
        %v831 = vpop.permute.xlu0 %830
        %v833 = vmul.f32 %v819, %v610
        %v834 = vmul.f32 %v823, %v611
        %v835 = vmul.f32 %v827, %v612
        %v836 = vmul.f32 %v831, %v613
        %v837 = vadd.f32 %v813, %v833
        %v838 = vadd.f32 %v814, %v834
        %v839 = vadd.f32 %v815, %v835
        %v840 = vadd.f32 %v816, %v836
        %v841 = vadd.f32 %v837, %v537
        %v842 = vadd.f32 %v838, %v537
        %v843 = vadd.f32 %v839, %v537
        %v844 = vadd.f32 %v840, %v537
        %v845 = vsel %vm623, %v841, -inf
        %846 = vmax.xlane.f32.xlu0 %v845
        %v847 = vpop.xlane.xlu0 %846
        %v848 = vsel %vm623, %v842, -inf
        %849 = vmax.xlane.f32.xlu0 %v848
        %v850 = vpop.xlane.xlu0 %849
        %v851 = vsel %vm623, %v843, -inf
        %852 = vmax.xlane.f32.xlu0 %v851
        %v853 = vpop.xlane.xlu0 %852
        %v854 = vsel %vm623, %v844, -inf
        %855 = vmax.xlane.f32.xlu0 %v854
        %v856 = vpop.xlane.xlu0 %855
        %v857 = vsub.f32 %v841, %v847
        %v858 = vsub.f32 %v842, %v850
        %v859 = vsub.f32 %v843, %v853
        %v860 = vsub.f32 %v844, %v856
        %v861 = vmul.f32 %v857, 1.442695
        %v862 = vpow.pop %v861
        %v863 = vmul.f32 %v858, 1.442695
        %v864 = vpow.pop %v863
        %v865 = vmul.f32 %v859, 1.442695
        %v866 = vpow.pop %v865
        %v867 = vmul.f32 %v860, 1.442695
        %v868 = vpow.pop %v867
        %v869 = vsel %vm623, %v862, 0.0
        %870 = vadd.xlane.f32.xlu0 %v869
        %v871 = vpop.xlane.xlu0 %870
        %v872 = vsel %vm623, %v864, 0.0
        %873 = vadd.xlane.f32.xlu0 %v872
        %v874 = vpop.xlane.xlu0 %873
        %v875 = vsel %vm623, %v866, 0.0
        %876 = vadd.xlane.f32.xlu0 %v875
        %v877 = vpop.xlane.xlu0 %876
        %v878 = vsel %vm623, %v868, 0.0
        %879 = vadd.xlane.f32.xlu0 %v878
        %v880 = vpop.xlane.xlu0 %879
        %v881 = vrcp.pop %v871
        %v882 = vrcp.pop %v874
        %v883 = vrcp.pop %v877
        %v884 = vrcp.pop %v880
        %v885 = vmul.f32 %v862, %v881
        %v886 = vmul.f32 %v864, %v882
        %v887 = vmul.f32 %v866, %v883
        %v888 = vmul.f32 %v868, %v884
        %v889 = vmul.f32 %v885, %v614
        %v890 = vmul.f32 %v886, %v615
        %v891 = vmul.f32 %v887, %v616
        %v892 = vmul.f32 %v888, %v617
        %v893 = vsel %vm623, %v889, 0.0
        %894 = vadd.xlane.f32.xlu0 %v893
        %v895 = vpop.xlane.xlu0 %894
        %v896 = vsel %vm623, %v890, 0.0
        %897 = vadd.xlane.f32.xlu0 %v896
        %v898 = vpop.xlane.xlu0 %897
        %v899 = vsel %vm623, %v891, 0.0
        %900 = vadd.xlane.f32.xlu0 %v899
        %v901 = vpop.xlane.xlu0 %900
        %v902 = vsel %vm623, %v892, 0.0
        %903 = vadd.xlane.f32.xlu0 %v902
        %v904 = vpop.xlane.xlu0 %903
        %v905 = vmul.f32 %v885, %v618
        %v906 = vmul.f32 %v886, %v619
        %v907 = vmul.f32 %v887, %v620
        %v908 = vmul.f32 %v888, %v621
        %v909 = vsel %vm623, %v905, 0.0
        %910 = vadd.xlane.f32.xlu0 %v909
        %v911 = vpop.xlane.xlu0 %910
        %v912 = vsel %vm623, %v906, 0.0
        %913 = vadd.xlane.f32.xlu0 %v912
        %v914 = vpop.xlane.xlu0 %913
        %v915 = vsel %vm623, %v907, 0.0
        %916 = vadd.xlane.f32.xlu0 %v915
        %v917 = vpop.xlane.xlu0 %916
        %v918 = vsel %vm623, %v908, 0.0
        %919 = vadd.xlane.f32.xlu0 %v918
        %v920 = vpop.xlane.xlu0 %919
        %v921 = vmul.f32 %v885, %v496
        %v922 = vmul.f32 %v886, %v497
        %v923 = vmul.f32 %v887, %v498
        %v924 = vmul.f32 %v888, %v499
        %v925 = vsel %vm623, %v921, 0.0
        %926 = vadd.xlane.f32.xlu0 %v925
        %v927 = vpop.xlane.xlu0 %926
        %v928 = vsel %vm623, %v922, 0.0
        %929 = vadd.xlane.f32.xlu0 %v928
        %v930 = vpop.xlane.xlu0 %929
        %v931 = vsel %vm623, %v923, 0.0
        %932 = vadd.xlane.f32.xlu0 %v931
        %v933 = vpop.xlane.xlu0 %932
        %v934 = vsel %vm623, %v924, 0.0
        %935 = vadd.xlane.f32.xlu0 %v934
        %v936 = vpop.xlane.xlu0 %935
        %v937 = vmul.f32 %v885, %v528
        %v938 = vmul.f32 %v886, %v529
        %v939 = vmul.f32 %v887, %v530
        %v940 = vmul.f32 %v888, %v531
        %v941 = vsel %vm623, %v937, 0.0
        %942 = vadd.xlane.f32.xlu0 %v941
        %v943 = vpop.xlane.xlu0 %942
        %v944 = vsel %vm623, %v938, 0.0
        %945 = vadd.xlane.f32.xlu0 %v944
        %v946 = vpop.xlane.xlu0 %945
        %v947 = vsel %vm623, %v939, 0.0
        %948 = vadd.xlane.f32.xlu0 %v947
        %v949 = vpop.xlane.xlu0 %948
        %v950 = vsel %vm623, %v940, 0.0
        %951 = vadd.xlane.f32.xlu0 %v950
        %v952 = vpop.xlane.xlu0 %951
        %v953 = vmul.f32 %v885, %v610
        %v954 = vmul.f32 %v886, %v611
        %v955 = vmul.f32 %v887, %v612
        %v956 = vmul.f32 %v888, %v613
        %v957 = vsel %vm623, %v953, 0.0
        %958 = vadd.xlane.f32.xlu0 %v957
        %v959 = vpop.xlane.xlu0 %958
        %v960 = vsel %vm623, %v954, 0.0
        %961 = vadd.xlane.f32.xlu0 %v960
        %v962 = vpop.xlane.xlu0 %961
        %v963 = vsel %vm623, %v955, 0.0
        %964 = vadd.xlane.f32.xlu0 %v963
        %v965 = vpop.xlane.xlu0 %964
        %v966 = vsel %vm623, %v956, 0.0
        %967 = vadd.xlane.f32.xlu0 %v966
        %v968 = vpop.xlane.xlu0 %967
        %969 = vset.pattern.permute.xlu0 5
        %970 = vperm.xlu0 %969, %v703
        %v971 = vpop.permute.xlu0 %970
        %973 = vset.pattern.permute.xlu0 5
        %974 = vperm.xlu0 %973, %v708
        %v975 = vpop.permute.xlu0 %974
        %977 = vset.pattern.permute.xlu0 5
        %978 = vperm.xlu0 %977, %v713
        %v979 = vpop.permute.xlu0 %978
        %981 = vset.pattern.permute.xlu0 5
        %982 = vperm.xlu0 %981, %v718
        %v983 = vpop.permute.xlu0 %982
        %v985 = vmul.f32 %v971, %v614
        %v986 = vmul.f32 %v975, %v615
        %v987 = vmul.f32 %v979, %v616
        %v988 = vmul.f32 %v983, %v617
        %989 = vset.pattern.permute.xlu0 6
        %990 = vperm.xlu0 %989, %v703
        %v991 = vpop.permute.xlu0 %990
        %993 = vset.pattern.permute.xlu0 6
        %994 = vperm.xlu0 %993, %v708
        %v995 = vpop.permute.xlu0 %994
        %997 = vset.pattern.permute.xlu0 6
        %998 = vperm.xlu0 %997, %v713
        %v999 = vpop.permute.xlu0 %998
        %1001 = vset.pattern.permute.xlu0 6
        %1002 = vperm.xlu0 %1001, %v718
        %v1003 = vpop.permute.xlu0 %1002
        %v1005 = vmul.f32 %v991, %v618
        %v1006 = vmul.f32 %v995, %v619
        %v1007 = vmul.f32 %v999, %v620
        %v1008 = vmul.f32 %v1003, %v621
        %v1009 = vadd.f32 %v985, %v1005
        %v1010 = vadd.f32 %v986, %v1006
        %v1011 = vadd.f32 %v987, %v1007
        %v1012 = vadd.f32 %v988, %v1008
        %1013 = vset.pattern.permute.xlu0 7
        %1014 = vperm.xlu0 %1013, %v703
        %v1015 = vpop.permute.xlu0 %1014
        %1017 = vset.pattern.permute.xlu0 7
        %1018 = vperm.xlu0 %1017, %v708
        %v1019 = vpop.permute.xlu0 %1018
        %1021 = vset.pattern.permute.xlu0 7
        %1022 = vperm.xlu0 %1021, %v713
        %v1023 = vpop.permute.xlu0 %1022
        %1025 = vset.pattern.permute.xlu0 7
        %1026 = vperm.xlu0 %1025, %v718
        %v1027 = vpop.permute.xlu0 %1026
        %v1029 = vmul.f32 %v1015, %v496
        %v1030 = vmul.f32 %v1019, %v497
        %v1031 = vmul.f32 %v1023, %v498
        %v1032 = vmul.f32 %v1027, %v499
        %v1033 = vadd.f32 %v1009, %v1029
        %v1034 = vadd.f32 %v1010, %v1030
        %v1035 = vadd.f32 %v1011, %v1031
        %v1036 = vadd.f32 %v1012, %v1032
        %1037 = vset.pattern.permute.xlu0 8
        %1038 = vperm.xlu0 %1037, %v703
        %v1039 = vpop.permute.xlu0 %1038
        %1041 = vset.pattern.permute.xlu0 8
        %1042 = vperm.xlu0 %1041, %v708
        %v1043 = vpop.permute.xlu0 %1042
        %1045 = vset.pattern.permute.xlu0 8
        %1046 = vperm.xlu0 %1045, %v713
        %v1047 = vpop.permute.xlu0 %1046
        %1049 = vset.pattern.permute.xlu0 8
        %1050 = vperm.xlu0 %1049, %v718
        %v1051 = vpop.permute.xlu0 %1050
        %v1053 = vmul.f32 %v1039, %v528
        %v1054 = vmul.f32 %v1043, %v529
        %v1055 = vmul.f32 %v1047, %v530
        %v1056 = vmul.f32 %v1051, %v531
        %v1057 = vadd.f32 %v1033, %v1053
        %v1058 = vadd.f32 %v1034, %v1054
        %v1059 = vadd.f32 %v1035, %v1055
        %v1060 = vadd.f32 %v1036, %v1056
        %1061 = vset.pattern.permute.xlu0 9
        %1062 = vperm.xlu0 %1061, %v703
        %v1063 = vpop.permute.xlu0 %1062
        %1065 = vset.pattern.permute.xlu0 9
        %1066 = vperm.xlu0 %1065, %v708
        %v1067 = vpop.permute.xlu0 %1066
        %1069 = vset.pattern.permute.xlu0 9
        %1070 = vperm.xlu0 %1069, %v713
        %v1071 = vpop.permute.xlu0 %1070
        %1073 = vset.pattern.permute.xlu0 9
        %1074 = vperm.xlu0 %1073, %v718
        %v1075 = vpop.permute.xlu0 %1074
        %v1077 = vmul.f32 %v1063, %v610
        %v1078 = vmul.f32 %v1067, %v611
        %v1079 = vmul.f32 %v1071, %v612
        %v1080 = vmul.f32 %v1075, %v613
        %v1081 = vadd.f32 %v1057, %v1077
        %v1082 = vadd.f32 %v1058, %v1078
        %v1083 = vadd.f32 %v1059, %v1079
        %v1084 = vadd.f32 %v1060, %v1080
        %v1085 = vadd.f32 %v1081, %v537
        %v1086 = vadd.f32 %v1082, %v537
        %v1087 = vadd.f32 %v1083, %v537
        %v1088 = vadd.f32 %v1084, %v537
        %v1089 = vsel %vm623, %v1085, -inf
        %1090 = vmax.xlane.f32.xlu0 %v1089
        %v1091 = vpop.xlane.xlu0 %1090
        %v1092 = vsel %vm623, %v1086, -inf
        %1093 = vmax.xlane.f32.xlu0 %v1092
        %v1094 = vpop.xlane.xlu0 %1093
        %v1095 = vsel %vm623, %v1087, -inf
        %1096 = vmax.xlane.f32.xlu0 %v1095
        %v1097 = vpop.xlane.xlu0 %1096
        %v1098 = vsel %vm623, %v1088, -inf
        %1099 = vmax.xlane.f32.xlu0 %v1098
        %v1100 = vpop.xlane.xlu0 %1099
        %v1101 = vsub.f32 %v1085, %v1091
        %v1102 = vsub.f32 %v1086, %v1094
        %v1103 = vsub.f32 %v1087, %v1097
        %v1104 = vsub.f32 %v1088, %v1100
        %v1105 = vmul.f32 %v1101, 1.442695
        %v1106 = vpow.pop %v1105
        %v1107 = vmul.f32 %v1102, 1.442695
        %v1108 = vpow.pop %v1107
        %v1109 = vmul.f32 %v1103, 1.442695
        %v1110 = vpow.pop %v1109
        %v1111 = vmul.f32 %v1104, 1.442695
        %v1112 = vpow.pop %v1111
        %v1113 = vsel %vm623, %v1106, 0.0
        %1114 = vadd.xlane.f32.xlu0 %v1113
        %v1115 = vpop.xlane.xlu0 %1114
        %v1116 = vsel %vm623, %v1108, 0.0
        %1117 = vadd.xlane.f32.xlu0 %v1116
        %v1118 = vpop.xlane.xlu0 %1117
        %v1119 = vsel %vm623, %v1110, 0.0
        %1120 = vadd.xlane.f32.xlu0 %v1119
        %v1121 = vpop.xlane.xlu0 %1120
        %v1122 = vsel %vm623, %v1112, 0.0
        %1123 = vadd.xlane.f32.xlu0 %v1122
        %v1124 = vpop.xlane.xlu0 %1123
        %v1125 = vrcp.pop %v1115
        %v1126 = vrcp.pop %v1118
        %v1127 = vrcp.pop %v1121
        %v1128 = vrcp.pop %v1124
        %v1129 = vmul.f32 %v1106, %v1125
        %v1130 = vmul.f32 %v1108, %v1126
        %v1131 = vmul.f32 %v1110, %v1127
        %v1132 = vmul.f32 %v1112, %v1128
        %v1133 = vmul.f32 %v1129, %v614
        %v1134 = vmul.f32 %v1130, %v615
        %v1135 = vmul.f32 %v1131, %v616
        %v1136 = vmul.f32 %v1132, %v617
        %v1137 = vsel %vm623, %v1133, 0.0
        %1138 = vadd.xlane.f32.xlu0 %v1137
        %v1139 = vpop.xlane.xlu0 %1138
        %v1140 = vsel %vm623, %v1134, 0.0
        %1141 = vadd.xlane.f32.xlu0 %v1140
        %v1142 = vpop.xlane.xlu0 %1141
        %v1143 = vsel %vm623, %v1135, 0.0
        %1144 = vadd.xlane.f32.xlu0 %v1143
        %v1145 = vpop.xlane.xlu0 %1144
        %v1146 = vsel %vm623, %v1136, 0.0
        %1147 = vadd.xlane.f32.xlu0 %v1146
        %v1148 = vpop.xlane.xlu0 %1147
        %v1149 = vmul.f32 %v1129, %v618
        %v1150 = vmul.f32 %v1130, %v619
        %v1151 = vmul.f32 %v1131, %v620
        %v1152 = vmul.f32 %v1132, %v621
        %v1153 = vsel %vm623, %v1149, 0.0
        %1154 = vadd.xlane.f32.xlu0 %v1153
        %v1155 = vpop.xlane.xlu0 %1154
        %v1156 = vsel %vm623, %v1150, 0.0
        %1157 = vadd.xlane.f32.xlu0 %v1156
        %v1158 = vpop.xlane.xlu0 %1157
        %v1159 = vsel %vm623, %v1151, 0.0
        %1160 = vadd.xlane.f32.xlu0 %v1159
        %v1161 = vpop.xlane.xlu0 %1160
        %v1162 = vsel %vm623, %v1152, 0.0
        %1163 = vadd.xlane.f32.xlu0 %v1162
        %v1164 = vpop.xlane.xlu0 %1163
        %v1165 = vmul.f32 %v1129, %v496
        %v1166 = vmul.f32 %v1130, %v497
        %v1167 = vmul.f32 %v1131, %v498
        %v1168 = vmul.f32 %v1132, %v499
        %v1169 = vsel %vm623, %v1165, 0.0
        %1170 = vadd.xlane.f32.xlu0 %v1169
        %v1171 = vpop.xlane.xlu0 %1170
        %v1172 = vsel %vm623, %v1166, 0.0
        %1173 = vadd.xlane.f32.xlu0 %v1172
        %v1174 = vpop.xlane.xlu0 %1173
        %v1175 = vsel %vm623, %v1167, 0.0
        %1176 = vadd.xlane.f32.xlu0 %v1175
        %v1177 = vpop.xlane.xlu0 %1176
        %v1178 = vsel %vm623, %v1168, 0.0
        %1179 = vadd.xlane.f32.xlu0 %v1178
        %v1180 = vpop.xlane.xlu0 %1179
        %v1181 = vmul.f32 %v1129, %v528
        %v1182 = vmul.f32 %v1130, %v529
        %v1183 = vmul.f32 %v1131, %v530
        %v1184 = vmul.f32 %v1132, %v531
        %v1185 = vsel %vm623, %v1181, 0.0
        %1186 = vadd.xlane.f32.xlu0 %v1185
        %v1187 = vpop.xlane.xlu0 %1186
        %v1188 = vsel %vm623, %v1182, 0.0
        %1189 = vadd.xlane.f32.xlu0 %v1188
        %v1190 = vpop.xlane.xlu0 %1189
        %v1191 = vsel %vm623, %v1183, 0.0
        %1192 = vadd.xlane.f32.xlu0 %v1191
        %v1193 = vpop.xlane.xlu0 %1192
        %v1194 = vsel %vm623, %v1184, 0.0
        %1195 = vadd.xlane.f32.xlu0 %v1194
        %v1196 = vpop.xlane.xlu0 %1195
        %v1197 = vmul.f32 %v1129, %v610
        %v1198 = vmul.f32 %v1130, %v611
        %v1199 = vmul.f32 %v1131, %v612
        %v1200 = vmul.f32 %v1132, %v613
        %v1201 = vsel %vm623, %v1197, 0.0
        %1202 = vadd.xlane.f32.xlu0 %v1201
        %v1203 = vpop.xlane.xlu0 %1202
        %v1204 = vsel %vm623, %v1198, 0.0
        %1205 = vadd.xlane.f32.xlu0 %v1204
        %v1206 = vpop.xlane.xlu0 %1205
        %v1207 = vsel %vm623, %v1199, 0.0
        %1208 = vadd.xlane.f32.xlu0 %v1207
        %v1209 = vpop.xlane.xlu0 %1208
        %v1210 = vsel %vm623, %v1200, 0.0
        %1211 = vadd.xlane.f32.xlu0 %v1210
        %v1212 = vpop.xlane.xlu0 %1211
        %1213 = vset.pattern.permute.xlu0 10
        %1214 = vperm.xlu0 %1213, %v703
        %v1215 = vpop.permute.xlu0 %1214
        %1217 = vset.pattern.permute.xlu0 10
        %1218 = vperm.xlu0 %1217, %v708
        %v1219 = vpop.permute.xlu0 %1218
        %1221 = vset.pattern.permute.xlu0 10
        %1222 = vperm.xlu0 %1221, %v713
        %v1223 = vpop.permute.xlu0 %1222
        %1225 = vset.pattern.permute.xlu0 10
        %1226 = vperm.xlu0 %1225, %v718
        %v1227 = vpop.permute.xlu0 %1226
        %v1229 = vmul.f32 %v1215, %v614
        %v1230 = vmul.f32 %v1219, %v615
        %v1231 = vmul.f32 %v1223, %v616
        %v1232 = vmul.f32 %v1227, %v617
        %1233 = vset.pattern.permute.xlu0 11
        %1234 = vperm.xlu0 %1233, %v703
        %v1235 = vpop.permute.xlu0 %1234
        %1237 = vset.pattern.permute.xlu0 11
        %1238 = vperm.xlu0 %1237, %v708
        %v1239 = vpop.permute.xlu0 %1238
        %1241 = vset.pattern.permute.xlu0 11
        %1242 = vperm.xlu0 %1241, %v713
        %v1243 = vpop.permute.xlu0 %1242
        %1245 = vset.pattern.permute.xlu0 11
        %1246 = vperm.xlu0 %1245, %v718
        %v1247 = vpop.permute.xlu0 %1246
        %v1249 = vmul.f32 %v1235, %v618
        %v1250 = vmul.f32 %v1239, %v619
        %v1251 = vmul.f32 %v1243, %v620
        %v1252 = vmul.f32 %v1247, %v621
        %v1253 = vadd.f32 %v1229, %v1249
        %v1254 = vadd.f32 %v1230, %v1250
        %v1255 = vadd.f32 %v1231, %v1251
        %v1256 = vadd.f32 %v1232, %v1252
        %1257 = vset.pattern.permute.xlu0 12
        %1258 = vperm.xlu0 %1257, %v703
        %v1259 = vpop.permute.xlu0 %1258
        %1261 = vset.pattern.permute.xlu0 12
        %1262 = vperm.xlu0 %1261, %v708
        %v1263 = vpop.permute.xlu0 %1262
        %1265 = vset.pattern.permute.xlu0 12
        %1266 = vperm.xlu0 %1265, %v713
        %v1267 = vpop.permute.xlu0 %1266
        %1269 = vset.pattern.permute.xlu0 12
        %1270 = vperm.xlu0 %1269, %v718
        %v1271 = vpop.permute.xlu0 %1270
        %v1273 = vmul.f32 %v1259, %v496
        %v1274 = vmul.f32 %v1263, %v497
        %v1275 = vmul.f32 %v1267, %v498
        %v1276 = vmul.f32 %v1271, %v499
        %v1277 = vadd.f32 %v1253, %v1273
        %v1278 = vadd.f32 %v1254, %v1274
        %v1279 = vadd.f32 %v1255, %v1275
        %v1280 = vadd.f32 %v1256, %v1276
        %1281 = vset.pattern.permute.xlu0 13
        %1282 = vperm.xlu0 %1281, %v703
        %v1283 = vpop.permute.xlu0 %1282
        %1285 = vset.pattern.permute.xlu0 13
        %1286 = vperm.xlu0 %1285, %v708
        %v1287 = vpop.permute.xlu0 %1286
        %1289 = vset.pattern.permute.xlu0 13
        %1290 = vperm.xlu0 %1289, %v713
        %v1291 = vpop.permute.xlu0 %1290
        %1293 = vset.pattern.permute.xlu0 13
        %1294 = vperm.xlu0 %1293, %v718
        %v1295 = vpop.permute.xlu0 %1294
        %v1297 = vmul.f32 %v1283, %v528
        %v1298 = vmul.f32 %v1287, %v529
        %v1299 = vmul.f32 %v1291, %v530
        %v1300 = vmul.f32 %v1295, %v531
        %v1301 = vadd.f32 %v1277, %v1297
        %v1302 = vadd.f32 %v1278, %v1298
        %v1303 = vadd.f32 %v1279, %v1299
        %v1304 = vadd.f32 %v1280, %v1300
        %1305 = vset.pattern.permute.xlu0 14
        %1306 = vperm.xlu0 %1305, %v703
        %v1307 = vpop.permute.xlu0 %1306
        %1309 = vset.pattern.permute.xlu0 14
        %1310 = vperm.xlu0 %1309, %v708
        %v1311 = vpop.permute.xlu0 %1310
        %1313 = vset.pattern.permute.xlu0 14
        %1314 = vperm.xlu0 %1313, %v713
        %v1315 = vpop.permute.xlu0 %1314
        %1317 = vset.pattern.permute.xlu0 14
        %1318 = vperm.xlu0 %1317, %v718
        %v1319 = vpop.permute.xlu0 %1318
        %v1321 = vmul.f32 %v1307, %v610
        %v1322 = vmul.f32 %v1311, %v611
        %v1323 = vmul.f32 %v1315, %v612
        %v1324 = vmul.f32 %v1319, %v613
        %v1325 = vadd.f32 %v1301, %v1321
        %v1326 = vadd.f32 %v1302, %v1322
        %v1327 = vadd.f32 %v1303, %v1323
        %v1328 = vadd.f32 %v1304, %v1324
        %v1329 = vadd.f32 %v1325, %v537
        %v1330 = vadd.f32 %v1326, %v537
        %v1331 = vadd.f32 %v1327, %v537
        %v1332 = vadd.f32 %v1328, %v537
        %v1333 = vsel %vm623, %v1329, -inf
        %1334 = vmax.xlane.f32.xlu0 %v1333
        %v1335 = vpop.xlane.xlu0 %1334
        %v1336 = vsel %vm623, %v1330, -inf
        %1337 = vmax.xlane.f32.xlu0 %v1336
        %v1338 = vpop.xlane.xlu0 %1337
        %v1339 = vsel %vm623, %v1331, -inf
        %1340 = vmax.xlane.f32.xlu0 %v1339
        %v1341 = vpop.xlane.xlu0 %1340
        %v1342 = vsel %vm623, %v1332, -inf
        %1343 = vmax.xlane.f32.xlu0 %v1342
        %v1344 = vpop.xlane.xlu0 %1343
        %v1345 = vsub.f32 %v1329, %v1335
        %v1346 = vsub.f32 %v1330, %v1338
        %v1347 = vsub.f32 %v1331, %v1341
        %v1348 = vsub.f32 %v1332, %v1344
        %v1349 = vmul.f32 %v1345, 1.442695
        %v1350 = vpow.pop %v1349
        %v1351 = vmul.f32 %v1346, 1.442695
        %v1352 = vpow.pop %v1351
        %v1353 = vmul.f32 %v1347, 1.442695
        %v1354 = vpow.pop %v1353
        %v1355 = vmul.f32 %v1348, 1.442695
        %v1356 = vpow.pop %v1355
        %v1357 = vsel %vm623, %v1350, 0.0
        %1358 = vadd.xlane.f32.xlu0 %v1357
        %v1359 = vpop.xlane.xlu0 %1358
        %v1360 = vsel %vm623, %v1352, 0.0
        %1361 = vadd.xlane.f32.xlu0 %v1360
        %v1362 = vpop.xlane.xlu0 %1361
        %v1363 = vsel %vm623, %v1354, 0.0
        %1364 = vadd.xlane.f32.xlu0 %v1363
        %v1365 = vpop.xlane.xlu0 %1364
        %v1366 = vsel %vm623, %v1356, 0.0
        %1367 = vadd.xlane.f32.xlu0 %v1366
        %v1368 = vpop.xlane.xlu0 %1367
        %v1369 = vrcp.pop %v1359
        %v1370 = vrcp.pop %v1362
        %v1371 = vrcp.pop %v1365
        %v1372 = vrcp.pop %v1368
        %v1373 = vmul.f32 %v1350, %v1369
        %v1374 = vmul.f32 %v1352, %v1370
        %v1375 = vmul.f32 %v1354, %v1371
        %v1376 = vmul.f32 %v1356, %v1372
        %v1377 = vmul.f32 %v1373, %v614
        %v1378 = vmul.f32 %v1374, %v615
        %v1379 = vmul.f32 %v1375, %v616
        %v1380 = vmul.f32 %v1376, %v617
        %v1381 = vsel %vm623, %v1377, 0.0
        %1382 = vadd.xlane.f32.xlu0 %v1381
        %v1383 = vpop.xlane.xlu0 %1382
        %v1384 = vsel %vm623, %v1378, 0.0
        %1385 = vadd.xlane.f32.xlu0 %v1384
        %v1386 = vpop.xlane.xlu0 %1385
        %v1387 = vsel %vm623, %v1379, 0.0
        %1388 = vadd.xlane.f32.xlu0 %v1387
        %v1389 = vpop.xlane.xlu0 %1388
        %v1390 = vsel %vm623, %v1380, 0.0
        %1391 = vadd.xlane.f32.xlu0 %v1390
        %v1392 = vpop.xlane.xlu0 %1391
        %v1393 = vmul.f32 %v1373, %v618
        %v1394 = vmul.f32 %v1374, %v619
        %v1395 = vmul.f32 %v1375, %v620
        %v1396 = vmul.f32 %v1376, %v621
        %v1397 = vsel %vm623, %v1393, 0.0
        %1398 = vadd.xlane.f32.xlu0 %v1397
        %v1399 = vpop.xlane.xlu0 %1398
        %v1400 = vsel %vm623, %v1394, 0.0
        %1401 = vadd.xlane.f32.xlu0 %v1400
        %v1402 = vpop.xlane.xlu0 %1401
        %v1403 = vsel %vm623, %v1395, 0.0
        %1404 = vadd.xlane.f32.xlu0 %v1403
        %v1405 = vpop.xlane.xlu0 %1404
        %v1406 = vsel %vm623, %v1396, 0.0
        %1407 = vadd.xlane.f32.xlu0 %v1406
        %v1408 = vpop.xlane.xlu0 %1407
        %v1409 = vmul.f32 %v1373, %v496
        %v1410 = vmul.f32 %v1374, %v497
        %v1411 = vmul.f32 %v1375, %v498
        %v1412 = vmul.f32 %v1376, %v499
        %v1413 = vsel %vm623, %v1409, 0.0
        %1414 = vadd.xlane.f32.xlu0 %v1413
        %v1415 = vpop.xlane.xlu0 %1414
        %v1416 = vsel %vm623, %v1410, 0.0
        %1417 = vadd.xlane.f32.xlu0 %v1416
        %v1418 = vpop.xlane.xlu0 %1417
        %v1419 = vsel %vm623, %v1411, 0.0
        %1420 = vadd.xlane.f32.xlu0 %v1419
        %v1421 = vpop.xlane.xlu0 %1420
        %v1422 = vsel %vm623, %v1412, 0.0
        %1423 = vadd.xlane.f32.xlu0 %v1422
        %v1424 = vpop.xlane.xlu0 %1423
        %v1425 = vmul.f32 %v1373, %v528
        %v1426 = vmul.f32 %v1374, %v529
        %v1427 = vmul.f32 %v1375, %v530
        %v1428 = vmul.f32 %v1376, %v531
        %v1429 = vsel %vm623, %v1425, 0.0
        %1430 = vadd.xlane.f32.xlu0 %v1429
        %v1431 = vpop.xlane.xlu0 %1430
        %v1432 = vsel %vm623, %v1426, 0.0
        %1433 = vadd.xlane.f32.xlu0 %v1432
        %v1434 = vpop.xlane.xlu0 %1433
        %v1435 = vsel %vm623, %v1427, 0.0
        %1436 = vadd.xlane.f32.xlu0 %v1435
        %v1437 = vpop.xlane.xlu0 %1436
        %v1438 = vsel %vm623, %v1428, 0.0
        %1439 = vadd.xlane.f32.xlu0 %v1438
        %v1440 = vpop.xlane.xlu0 %1439
        %v1441 = vmul.f32 %v1373, %v610
        %v1442 = vmul.f32 %v1374, %v611
        %v1443 = vmul.f32 %v1375, %v612
        %v1444 = vmul.f32 %v1376, %v613
        %v1445 = vsel %vm623, %v1441, 0.0
        %1446 = vadd.xlane.f32.xlu0 %v1445
        %v1447 = vpop.xlane.xlu0 %1446
        %v1448 = vsel %vm623, %v1442, 0.0
        %1449 = vadd.xlane.f32.xlu0 %v1448
        %v1450 = vpop.xlane.xlu0 %1449
        %v1451 = vsel %vm623, %v1443, 0.0
        %1452 = vadd.xlane.f32.xlu0 %v1451
        %v1453 = vpop.xlane.xlu0 %1452
        %v1454 = vsel %vm623, %v1444, 0.0
        %1455 = vadd.xlane.f32.xlu0 %v1454
        %v1456 = vpop.xlane.xlu0 %1455
        %vm1457 = vcmask 7168
        %v1458 = vsel %vm1457, %v895, %v911
        %v1459 = vsel %vm1457, %v898, %v914
        %v1460 = vsel %vm1457, %v901, %v917
        %v1461 = vsel %vm1457, %v904, %v920
        %vm1462 = vcmask 15360
        %v1463 = vsel %vm1462, %v1458, %v927
        %v1464 = vsel %vm1462, %v1459, %v930
        %v1465 = vsel %vm1462, %v1460, %v933
        %v1466 = vsel %vm1462, %v1461, %v936
        %vm1467 = vcmask 23552
        %v1468 = vsel %vm1467, %v1463, %v943
        %v1469 = vsel %vm1467, %v1464, %v946
        %v1470 = vsel %vm1467, %v1465, %v949
        %v1471 = vsel %vm1467, %v1466, %v952
        %vm1472 = vcmask 31744
        %v1473 = vsel %vm1472, %v1468, %v959
        %v1474 = vsel %vm1472, %v1469, %v962
        %v1475 = vsel %vm1472, %v1470, %v965
        %v1476 = vsel %vm1472, %v1471, %v968
        %vm1477 = vcmask 39936
        %v1478 = vsel %vm1477, %v1473, %v1139
        %v1479 = vsel %vm1477, %v1474, %v1142
        %v1480 = vsel %vm1477, %v1475, %v1145
        %v1481 = vsel %vm1477, %v1476, %v1148
        %vm1482 = vcmask 48128
        %v1483 = vsel %vm1482, %v1478, %v1155
        %v1484 = vsel %vm1482, %v1479, %v1158
        %v1485 = vsel %vm1482, %v1480, %v1161
        %v1486 = vsel %vm1482, %v1481, %v1164
        %vm1487 = vcmask 56320
        %v1488 = vsel %vm1487, %v1483, %v1171
        %v1489 = vsel %vm1487, %v1484, %v1174
        %v1490 = vsel %vm1487, %v1485, %v1177
        %v1491 = vsel %vm1487, %v1486, %v1180
        %v1492 = vsel %vm623, %v1488, %v1187
        %v1493 = vsel %vm623, %v1489, %v1190
        %v1494 = vsel %vm623, %v1490, %v1193
        %v1495 = vsel %vm623, %v1491, %v1196
        %vm1496 = vcmask 72704
        %v1497 = vsel %vm1496, %v1492, %v1203
        %v1498 = vsel %vm1496, %v1493, %v1206
        %v1499 = vsel %vm1496, %v1494, %v1209
        %v1500 = vsel %vm1496, %v1495, %v1212
        %vm1501 = vcmask 80896
        %v1502 = vsel %vm1501, %v1497, %v1383
        %v1503 = vsel %vm1501, %v1498, %v1386
        %v1504 = vsel %vm1501, %v1499, %v1389
        %v1505 = vsel %vm1501, %v1500, %v1392
        %vm1506 = vcmask 89088
        %v1507 = vsel %vm1506, %v1502, %v1399
        %v1508 = vsel %vm1506, %v1503, %v1402
        %v1509 = vsel %vm1506, %v1504, %v1405
        %v1510 = vsel %vm1506, %v1505, %v1408
        %vm1511 = vcmask 97280
        %v1512 = vsel %vm1511, %v1507, %v1415
        %v1513 = vsel %vm1511, %v1508, %v1418
        %v1514 = vsel %vm1511, %v1509, %v1421
        %v1515 = vsel %vm1511, %v1510, %v1424
        %vm1516 = vcmask 105472
        %v1517 = vsel %vm1516, %v1512, %v1431
        %v1518 = vsel %vm1516, %v1513, %v1434
        %v1519 = vsel %vm1516, %v1514, %v1437
        %v1520 = vsel %vm1516, %v1515, %v1440
        %vm1521 = vcmask 113664
        %v1522 = vsel %vm1521, %v1517, %v1447
        %v1523 = vsel %vm1521, %v1518, %v1450
        %v1524 = vsel %vm1521, %v1519, %v1453
        %v1525 = vsel %vm1521, %v1520, %v1456
        %v1526 = vld [vmem:[%s3] sm:$0xff]
        %v1527 = vld [vmem:[%s3 + $0x8] sm:$0x7f]
        %v1528 = vld [vmem:[%s4] sm:$0xff]
        %1529 = vmatprep.subr.mxu0 0.0
        %1530 = vmatpush1.msra.mxu0 %v1528
        %1531 = vmatprep.subr.mxu0 0.0
        %1532 = vmatpush1.msra.mxu0 0.0
        %1533 = vmatprep.subr.mxu0 0.0
        %1534 = vmatpush1.msra.mxu0 0.0
        %1535 = vmatprep.subr.mxu0 0.0
        %1536 = vmatpush1.msra.mxu0 0.0
        %1537 = vmatprep.subr.mxu0 0.0
        %1538 = vmatpush1.msra.mxu0 0.0
        %1539 = vmatprep.subr.mxu0 0.0
        %1540 = vmatpush1.msra.mxu0 0.0
        %1541 = vmatprep.subr.mxu0 0.0
        %1542 = vmatpush1.msra.mxu0 0.0
        %1543 = vmatprep.subr.mxu0 0.0
        %1544 = vmatpush1.msra.mxu0 0.0
        %1545 = vmatprep.subr.mxu0 0.0
        %1546 = vmatpush1.msra.mxu0 0.0
        %1547 = vmatprep.subr.mxu0 0.0
        %1548 = vmatpush1.msra.mxu0 0.0
        %1549 = vmatprep.subr.mxu0 0.0
        %1550 = vmatpush1.msra.mxu0 0.0
        %1551 = vmatprep.subr.mxu0 0.0
        %1552 = vmatpush1.msra.mxu0 0.0
        %1553 = vmatprep.subr.mxu0 0.0
        %1554 = vmatpush1.msra.mxu0 0.0
        %1555 = vmatprep.subr.mxu0 0.0
        %1556 = vmatpush1.msra.mxu0 0.0
        %1557 = vmatprep.subr.mxu0 0.0
        %1558 = vmatpush1.msra.mxu0 0.0
        %1559 = vmatprep.subr.mxu0 0.0
        %1560 = vmatpush1.msra.mxu0 0.0
        %1561 = vmatprep.subr.mxu0 0.0
        %1562 = vmatpush1.msra.mxu0 0.0
        %1563 = vmatprep.subr.mxu0 0.0
        %1564 = vmatpush1.msra.mxu0 0.0
        %1565 = vmatprep.subr.mxu0 0.0
        %1566 = vmatpush1.msra.mxu0 0.0
        %1567 = vmatprep.subr.mxu0 0.0
        %1568 = vmatpush1.msra.mxu0 0.0
        %1569 = vmatprep.subr.mxu0 0.0
        %1570 = vmatpush1.msra.mxu0 0.0
        %1571 = vmatprep.subr.mxu0 0.0
        %1572 = vmatpush1.msra.mxu0 0.0
        %1573 = vmatprep.subr.mxu0 0.0
        %1574 = vmatpush1.msra.mxu0 0.0
        %1575 = vmatprep.subr.mxu0 0.0
        %1576 = vmatpush1.msra.mxu0 0.0
        %1577 = vmatprep.subr.mxu0 0.0
        %1578 = vmatpush1.msra.mxu0 0.0
        %1579 = vmatprep.subr.mxu0 0.0
        %1580 = vmatpush1.msra.mxu0 0.0
        %1581 = vmatprep.subr.mxu0 0.0
        %1582 = vmatpush1.msra.mxu0 0.0
        %1583 = vmatprep.subr.mxu0 0.0
        %1584 = vmatpush1.msra.mxu0 0.0
        %1585 = vmatprep.subr.mxu0 0.0
        %1586 = vmatpush1.msra.mxu0 0.0
        %1587 = vmatprep.subr.mxu0 0.0
        %1588 = vmatpush1.msra.mxu0 0.0
        %1589 = vmatprep.subr.mxu0 0.0
        %1590 = vmatpush1.msra.mxu0 0.0
        %1591 = vmatprep.subr.mxu0 0.0
        %1592 = vmatpush1.msra.mxu0 0.0
        %1593 = vmatprep.mubr.f32.mxu0 0.0
        %1594 = vmatmul.mubr.f32.gmra.mrb[0].mxu0 %v625
        %v1595 = vpop.f32.mrb[0].mxu0
        %v1596 = vadd.f32 0.0, %v1595
        %v1597 = vpop.f32.mrb[0].mxu0
        %1598 = vmatprep.mubr.f32.mxu0 0.0
        %1599 = vmatmul.mubr.f32.gmra.mrb[0].mxu0 %v628
        %v1600 = vpop.f32.mrb[0].mxu0
        %v1601 = vadd.f32 0.0, %v1600
        %v1602 = vpop.f32.mrb[0].mxu0
        %1603 = vmatprep.mubr.f32.mxu0 0.0
        %1604 = vmatmul.mubr.f32.gmra.mrb[0].mxu0 %v631
        %v1605 = vpop.f32.mrb[0].mxu0
        %v1606 = vadd.f32 0.0, %v1605
        %v1607 = vpop.f32.mrb[0].mxu0
        %1608 = vmatprep.mubr.f32.mxu0 0.0
        %1609 = vmatmul.mubr.f32.gmra.mrb[0].mxu0 %v634
        %v1610 = vpop.f32.mrb[0].mxu0
        %v1611 = vadd.f32 0.0, %v1610
        %v1612 = vpop.f32.mrb[0].mxu0
        %1613 = vdwg.mxu0
        %vm1614 = vcmask 121856
        %v1616 = vsel %vm1614, %v1522, 0
        %v1619 = vsel %vm1614, %v1523, 0
        %v1622 = vsel %vm1614, %v1524, 0
        %v1625 = vsel %vm1614, %v1525, 0
        %vm1627 = vcmask 1046528
        %v1629 = vsel %vm1627, %v1527, 0
        %1631 = vmatprep.subr.mxu0 0.0
        %1632 = vmatpush1.msra.mxu0 %v1526
        %1633 = vmatprep.subr.mxu0 0.0
        %1634 = vmatpush1.msra.mxu0 %v1629
        %1635 = vmatprep.subr.mxu0 0.0
        %1636 = vmatpush1.msra.mxu0 0.0
        %1637 = vmatprep.subr.mxu0 0.0
        %1638 = vmatpush1.msra.mxu0 0.0
        %1639 = vmatprep.subr.mxu0 0.0
        %1640 = vmatpush1.msra.mxu0 0.0
        %1641 = vmatprep.subr.mxu0 0.0
        %1642 = vmatpush1.msra.mxu0 0.0
        %1643 = vmatprep.subr.mxu0 0.0
        %1644 = vmatpush1.msra.mxu0 0.0
        %1645 = vmatprep.subr.mxu0 0.0
        %1646 = vmatpush1.msra.mxu0 0.0
        %1647 = vmatprep.subr.mxu0 0.0
        %1648 = vmatpush1.msra.mxu0 0.0
        %1649 = vmatprep.subr.mxu0 0.0
        %1650 = vmatpush1.msra.mxu0 0.0
        %1651 = vmatprep.subr.mxu0 0.0
        %1652 = vmatpush1.msra.mxu0 0.0
        %1653 = vmatprep.subr.mxu0 0.0
        %1654 = vmatpush1.msra.mxu0 0.0
        %1655 = vmatprep.subr.mxu0 0.0
        %1656 = vmatpush1.msra.mxu0 0.0
        %1657 = vmatprep.subr.mxu0 0.0
        %1658 = vmatpush1.msra.mxu0 0.0
        %1659 = vmatprep.subr.mxu0 0.0
        %1660 = vmatpush1.msra.mxu0 0.0
        %1661 = vmatprep.subr.mxu0 0.0
        %1662 = vmatpush1.msra.mxu0 0.0
        %1663 = vmatprep.subr.mxu0 0.0
        %1664 = vmatpush1.msra.mxu0 0.0
        %1665 = vmatprep.subr.mxu0 0.0
        %1666 = vmatpush1.msra.mxu0 0.0
        %1667 = vmatprep.subr.mxu0 0.0
        %1668 = vmatpush1.msra.mxu0 0.0
        %1669 = vmatprep.subr.mxu0 0.0
        %1670 = vmatpush1.msra.mxu0 0.0
        %1671 = vmatprep.subr.mxu0 0.0
        %1672 = vmatpush1.msra.mxu0 0.0
        %1673 = vmatprep.subr.mxu0 0.0
        %1674 = vmatpush1.msra.mxu0 0.0
        %1675 = vmatprep.subr.mxu0 0.0
        %1676 = vmatpush1.msra.mxu0 0.0
        %1677 = vmatprep.subr.mxu0 0.0
        %1678 = vmatpush1.msra.mxu0 0.0
        %1679 = vmatprep.subr.mxu0 0.0
        %1680 = vmatpush1.msra.mxu0 0.0
        %1681 = vmatprep.subr.mxu0 0.0
        %1682 = vmatpush1.msra.mxu0 0.0
        %1683 = vmatprep.subr.mxu0 0.0
        %1684 = vmatpush1.msra.mxu0 0.0
        %1685 = vmatprep.subr.mxu0 0.0
        %1686 = vmatpush1.msra.mxu0 0.0
        %1687 = vmatprep.subr.mxu0 0.0
        %1688 = vmatpush1.msra.mxu0 0.0
        %1689 = vmatprep.subr.mxu0 0.0
        %1690 = vmatpush1.msra.mxu0 0.0
        %1691 = vmatprep.subr.mxu0 0.0
        %1692 = vmatpush1.msra.mxu0 0.0
        %1693 = vmatprep.subr.mxu0 0.0
        %1694 = vmatpush1.msra.mxu0 0.0
        %1695 = vmatprep.mubr.f32.mxu0 0.0
        %1696 = vmatmul.mubr.f32.gmra.mrb[0].mxu0 %v1616
        %v1697 = vpop.f32.mrb[0].mxu0
        %v1698 = vadd.f32 %v1596, %v1697
        %v1699 = vpop.f32.mrb[0].mxu0
        %1700 = vmatprep.mubr.f32.mxu0 0.0
        %1701 = vmatmul.mubr.f32.gmra.mrb[0].mxu0 %v1619
        %v1702 = vpop.f32.mrb[0].mxu0
        %v1703 = vadd.f32 %v1601, %v1702
        %v1704 = vpop.f32.mrb[0].mxu0
        %1705 = vmatprep.mubr.f32.mxu0 0.0
        %1706 = vmatmul.mubr.f32.gmra.mrb[0].mxu0 %v1622
        %v1707 = vpop.f32.mrb[0].mxu0
        %v1708 = vadd.f32 %v1606, %v1707
        %v1709 = vpop.f32.mrb[0].mxu0
        %1710 = vmatprep.mubr.f32.mxu0 0.0
        %1711 = vmatmul.mubr.f32.gmra.mrb[0].mxu0 %v1625
        %v1712 = vpop.f32.mrb[0].mxu0
        %v1713 = vadd.f32 %v1611, %v1712
        %v1714 = vpop.f32.mrb[0].mxu0
        %1715 = vdwg.mxu0
        %v1716 = vld [vmem:[%s5] sm:$0x1]
        %v1718 = vlaneseq
        %v1719 = vshrl.u32 %v1718, 7
        %v1720 = vsub.s32 0, %v1719
        %v1721 = vrot.slane %v1716, %v1720
        %v1723 = vadd.f32 %v1698, %v1721
        %v1724 = vadd.f32 %v1703, %v1721
        %v1725 = vadd.f32 %v1708, %v1721
        %v1726 = vadd.f32 %v1713, %v1721
        %v1727 = vmax.f32 %v1723, 0.0
        %v1728 = vmax.f32 %v1724, 0.0
        %v1729 = vmax.f32 %v1725, 0.0
        %v1730 = vmax.f32 %v1726, 0.0
        %v1731 = vld [vmem:[%s6] sm:$0xff]
        %v1732 = vld [vmem:[%s6 + $0x8] sm:$0xff]
        %v1733 = vld [vmem:[%s6 + $0x10] sm:$0xff]
        %v1734 = vld [vmem:[%s6 + $0x18] sm:$0xff]
        %v1735 = vld [vmem:[%s7] sm:$0x1]
        %v1737 = vlaneseq
        %v1738 = vshrl.u32 %v1737, 7
        %v1739 = vsub.s32 0, %v1738
        %v1740 = vrot.slane %v1735, %v1739
        %vm1742 = vcmask 261120
        %v1744 = vsel %vm1742, %v1727, 0
        %v1747 = vsel %vm1742, %v1728, 0
        %v1750 = vsel %vm1742, %v1729, 0
        %v1753 = vsel %vm1742, %v1730, 0
        %1755 = vmatprep.subr.mxu0 0.0
        %1756 = vmatpush1.msra.mxu0 %v1731
        %1757 = vmatprep.subr.mxu0 0.0
        %1758 = vmatpush1.msra.mxu0 %v1732
        %1759 = vmatprep.subr.mxu0 0.0
        %1760 = vmatpush1.msra.mxu0 %v1733
        %1761 = vmatprep.subr.mxu0 0.0
        %1762 = vmatpush1.msra.mxu0 %v1734
        %1763 = vmatprep.subr.mxu0 0.0
        %1764 = vmatpush1.msra.mxu0 0.0
        %1765 = vmatprep.subr.mxu0 0.0
        %1766 = vmatpush1.msra.mxu0 0.0
        %1767 = vmatprep.subr.mxu0 0.0
        %1768 = vmatpush1.msra.mxu0 0.0
        %1769 = vmatprep.subr.mxu0 0.0
        %1770 = vmatpush1.msra.mxu0 0.0
        %1771 = vmatprep.subr.mxu0 0.0
        %1772 = vmatpush1.msra.mxu0 0.0
        %1773 = vmatprep.subr.mxu0 0.0
        %1774 = vmatpush1.msra.mxu0 0.0
        %1775 = vmatprep.subr.mxu0 0.0
        %1776 = vmatpush1.msra.mxu0 0.0
        %1777 = vmatprep.subr.mxu0 0.0
        %1778 = vmatpush1.msra.mxu0 0.0
        %1779 = vmatprep.subr.mxu0 0.0
        %1780 = vmatpush1.msra.mxu0 0.0
        %1781 = vmatprep.subr.mxu0 0.0
        %1782 = vmatpush1.msra.mxu0 0.0
        %1783 = vmatprep.subr.mxu0 0.0
        %1784 = vmatpush1.msra.mxu0 0.0
        %1785 = vmatprep.subr.mxu0 0.0
        %1786 = vmatpush1.msra.mxu0 0.0
        %1787 = vmatprep.subr.mxu0 0.0
        %1788 = vmatpush1.msra.mxu0 0.0
        %1789 = vmatprep.subr.mxu0 0.0
        %1790 = vmatpush1.msra.mxu0 0.0
        %1791 = vmatprep.subr.mxu0 0.0
        %1792 = vmatpush1.msra.mxu0 0.0
        %1793 = vmatprep.subr.mxu0 0.0
        %1794 = vmatpush1.msra.mxu0 0.0
        %1795 = vmatprep.subr.mxu0 0.0
        %1796 = vmatpush1.msra.mxu0 0.0
        %1797 = vmatprep.subr.mxu0 0.0
        %1798 = vmatpush1.msra.mxu0 0.0
        %1799 = vmatprep.subr.mxu0 0.0
        %1800 = vmatpush1.msra.mxu0 0.0
        %1801 = vmatprep.subr.mxu0 0.0
        %1802 = vmatpush1.msra.mxu0 0.0
        %1803 = vmatprep.subr.mxu0 0.0
        %1804 = vmatpush1.msra.mxu0 0.0
        %1805 = vmatprep.subr.mxu0 0.0
        %1806 = vmatpush1.msra.mxu0 0.0
        %1807 = vmatprep.subr.mxu0 0.0
        %1808 = vmatpush1.msra.mxu0 0.0
        %1809 = vmatprep.subr.mxu0 0.0
        %1810 = vmatpush1.msra.mxu0 0.0
        %1811 = vmatprep.subr.mxu0 0.0
        %1812 = vmatpush1.msra.mxu0 0.0
        %1813 = vmatprep.subr.mxu0 0.0
        %1814 = vmatpush1.msra.mxu0 0.0
        %1815 = vmatprep.subr.mxu0 0.0
        %1816 = vmatpush1.msra.mxu0 0.0
        %1817 = vmatprep.subr.mxu0 0.0
        %1818 = vmatpush1.msra.mxu0 0.0
        %1819 = vmatprep.mubr.f32.mxu0 0.0
        %1820 = vmatmul.mubr.f32.gmra.mrb[0].mxu0 %v1744
        %v1821 = vpop.f32.mrb[0].mxu0
        %v1822 = vadd.f32 %v1740, %v1821
        %v1823 = vpop.f32.mrb[0].mxu0
        %1824 = vmatprep.mubr.f32.mxu0 0.0
        %1825 = vmatmul.mubr.f32.gmra.mrb[0].mxu0 %v1747
        %v1826 = vpop.f32.mrb[0].mxu0
        %v1827 = vadd.f32 %v1740, %v1826
        %v1828 = vpop.f32.mrb[0].mxu0
        %1829 = vmatprep.mubr.f32.mxu0 0.0
        %1830 = vmatmul.mubr.f32.gmra.mrb[0].mxu0 %v1750
        %v1831 = vpop.f32.mrb[0].mxu0
        %v1832 = vadd.f32 %v1740, %v1831
        %v1833 = vpop.f32.mrb[0].mxu0
        %1834 = vmatprep.mubr.f32.mxu0 0.0
        %1835 = vmatmul.mubr.f32.gmra.mrb[0].mxu0 %v1753
        %v1836 = vpop.f32.mrb[0].mxu0
        %v1837 = vadd.f32 %v1740, %v1836
        %v1838 = vpop.f32.mrb[0].mxu0
        %1839 = vdwg.mxu0
        %v1840 = vmax.f32 %v1822, 0.0
        %v1841 = vmax.f32 %v1827, 0.0
        %v1842 = vmax.f32 %v1832, 0.0
        %v1843 = vmax.f32 %v1837, 0.0
        %v1844 = vld [vmem:[%s8] sm:$0x1]
        %v1845 = vld [vmem:[#allocation2] sm:$0x1]
        %1847 = vset.pattern.permute.xlu0 0
        %1848 = vperm.xlu0 %1847, %v1845
        %v1849 = vpop.permute.xlu0 %1848
        %v1851 = vlaneseq
        %v1852 = vshrl.u32 %v1851, 7
        %v1853 = vsub.s32 0, %v1852
        %v1854 = vrot.slane %v1849, %v1853
        %v1856 = vsel %vm1742, %v1844, 0
        %v1859 = vsel %vm1742, %v1840, 0
        %v1862 = vsel %vm1742, %v1841, 0
        %v1865 = vsel %vm1742, %v1842, 0
        %v1868 = vsel %vm1742, %v1843, 0
        %1870 = vmatprep.subr.mxu0 0.0
        %1871 = vmatpush1.xpose.msra.mxu0 %v1859
        %1872 = vmatprep.subr.mxu0 0.0
        %1873 = vmatpush1.xpose.msra.mxu0 %v1862
        %1874 = vmatprep.subr.mxu0 0.0
        %1875 = vmatpush1.xpose.msra.mxu0 %v1865
        %1876 = vmatprep.subr.mxu0 0.0
        %1877 = vmatpush1.xpose.msra.mxu0 %v1868
        %1878 = vmatprep.subr.mxu0 0.0
        %1879 = vmatpush1.xpose.msra.mxu0 0.0
        %1880 = vmatprep.subr.mxu0 0.0
        %1881 = vmatpush1.xpose.msra.mxu0 0.0
        %1882 = vmatprep.subr.mxu0 0.0
        %1883 = vmatpush1.xpose.msra.mxu0 0.0
        %1884 = vmatprep.subr.mxu0 0.0
        %1885 = vmatpush1.xpose.msra.mxu0 0.0
        %1886 = vmatprep.subr.mxu0 0.0
        %1887 = vmatpush1.xpose.msra.mxu0 0.0
        %1888 = vmatprep.subr.mxu0 0.0
        %1889 = vmatpush1.xpose.msra.mxu0 0.0
        %1890 = vmatprep.subr.mxu0 0.0
        %1891 = vmatpush1.xpose.msra.mxu0 0.0
        %1892 = vmatprep.subr.mxu0 0.0
        %1893 = vmatpush1.xpose.msra.mxu0 0.0
        %1894 = vmatprep.subr.mxu0 0.0
        %1895 = vmatpush1.xpose.msra.mxu0 0.0
        %1896 = vmatprep.subr.mxu0 0.0
        %1897 = vmatpush1.xpose.msra.mxu0 0.0
        %1898 = vmatprep.subr.mxu0 0.0
        %1899 = vmatpush1.xpose.msra.mxu0 0.0
        %1900 = vmatprep.subr.mxu0 0.0
        %1901 = vmatpush1.xpose.msra.mxu0 0.0
        %1902 = vmatprep.subr.mxu0 0.0
        %1903 = vmatpush1.xpose.msra.mxu0 0.0
        %1904 = vmatprep.subr.mxu0 0.0
        %1905 = vmatpush1.xpose.msra.mxu0 0.0
        %1906 = vmatprep.subr.mxu0 0.0
        %1907 = vmatpush1.xpose.msra.mxu0 0.0
        %1908 = vmatprep.subr.mxu0 0.0
        %1909 = vmatpush1.xpose.msra.mxu0 0.0
        %1910 = vmatprep.subr.mxu0 0.0
        %1911 = vmatpush1.xpose.msra.mxu0 0.0
        %1912 = vmatprep.subr.mxu0 0.0
        %1913 = vmatpush1.xpose.msra.mxu0 0.0
        %1914 = vmatprep.subr.mxu0 0.0
        %1915 = vmatpush1.xpose.msra.mxu0 0.0
        %1916 = vmatprep.subr.mxu0 0.0
        %1917 = vmatpush1.xpose.msra.mxu0 0.0
        %1918 = vmatprep.subr.mxu0 0.0
        %1919 = vmatpush1.xpose.msra.mxu0 0.0
        %1920 = vmatprep.subr.mxu0 0.0
        %1921 = vmatpush1.xpose.msra.mxu0 0.0
        %1922 = vmatprep.subr.mxu0 0.0
        %1923 = vmatpush1.xpose.msra.mxu0 0.0
        %1924 = vmatprep.subr.mxu0 0.0
        %1925 = vmatpush1.xpose.msra.mxu0 0.0
        %1926 = vmatprep.subr.mxu0 0.0
        %1927 = vmatpush1.xpose.msra.mxu0 0.0
        %1928 = vmatprep.subr.mxu0 0.0
        %1929 = vmatpush1.xpose.msra.mxu0 0.0
        %1930 = vmatprep.subr.mxu0 0.0
        %1931 = vmatpush1.xpose.msra.mxu0 0.0
        %1932 = vmatprep.subr.mxu0 0.0
        %1933 = vmatpush1.xpose.msra.mxu0 0.0
        %1934 = vmatprep.mubr.f32.mxu0 0.0
        %1935 = vmatmul.mubr.f32.gmra.mrb[0].mxu0 %v1856
        %v1936 = vpop.f32.mrb[0].mxu0
        %v1937 = vadd.f32 %v1854, %v1936
        %v1938 = vpop.f32.mrb[0].mxu0
        %1939 = vdwg.mxu0
        %vm1940 = vcmask 253952
        %1941 = vst.msk [vmem:[%s383] sm:$0x1] %vm1940, %v1937
        %s1942 = sand.u32 %s255, 1
        %s1943 = scalar_lea.sflag [#allocation5], %s1942
        %s1944 = sand.u32 %s255, 1
        %s1945 = scalar_lea.vmem [#allocation6], %s1944
        // Predicated region
        $region65: #{tpu_custom_call.1} parent=59 // pred_check
          %p1946 = pneg %p265
        $region66: #{tpu_custom_call.1} parent=59 // pred_check_branch
          %1948 = sbr.rel (%p1946) target = $region68
        $region67: #{tpu_custom_call.1} parent=59 // pred_region
          %s1950 = ssub.s32 16, 16
          %1951 = vsyncadd %s1943, %s1950
          %s1952 = smul.addr %s27, 16
          %s1953 = scalar_lea.hbm %s10, %s1952
          %s1955 = sshll.u32 %s1945, 4
          %s1956 = int_to_ptr.vmem [resolvable:$true] %s1955
          %1958 = dma.vmem_to_hbm [thread:$0]  %s1956, 16, %s1953, %s1943
        $region68: #{tpu_custom_call.1} parent=59 // pred_fallthru
          _
      $region60: #{tpu_custom_call.1} parent=5 // pred_fallthru
        _
      %p1959 = scmp.le.s32.totalorder 2, %s22
      // Predicated region
      $region69: #{tpu_custom_call.1} parent=5 // pred_check
        %p1960 = pneg %p1959
      $region70: #{tpu_custom_call.1} parent=5 // pred_check_branch
        %1962 = sbr.rel (%p1960) target = $region72
      $region71: #{tpu_custom_call.1} parent=5 // pred_region
        %s1963 = ssub.s32 %s22, 2
        // Predicated region
        $region73: #{tpu_custom_call.1} parent=71 // pred_check
          %p1964 = pneg %p271
        $region74: #{tpu_custom_call.1} parent=71 // pred_check_branch
          %1966 = sbr.rel (%p1964) target = $region76
        $region75: #{tpu_custom_call.1} parent=71 // pred_region
          %s1967 = sand.u32 %s256, 1
          %s1968 = scalar_lea.sflag [#allocation5], %s1967
          %s1969 = sand.u32 %s256, 1
          %s1970 = scalar_lea.vmem [#allocation6], %s1969
          %1971 = dma.done %s1968, 16
        $region76: #{tpu_custom_call.1} parent=71 // pred_fallthru
          _
      $region72: #{tpu_custom_call.1} parent=5 // pred_fallthru
        _
    $region6: #{tpu_custom_call.1} parent=1 // loop_footer
      %s26 = sadd.s32 1, %s22
    $region7: #{tpu_custom_call.1} parent=1 // loop_footer_branch
      %21 = sbr.rel target = $region3
    $region8: #{tpu_custom_call.1} parent=1 // loop_exit
      _
    %1972 = vsyncpa [#allocation4], 1
    %s1973 = scalar_lea.sflag [#allocation4], 1
    %1974 = vsyncpa %s1973, 1
    %1975 = vsyncpa [#allocation5], 1
    %s1976 = scalar_lea.sflag [#allocation5], 1
    %1977 = vsyncpa %s1976, 1

</llo_original>
